<compile_context>
chip_gen: v6e
topology: v6e:2x2x1
jax: 0.10.0
libtpu: 0.0.40
codegen_flags: <defaults>
</compile_context>

<pallas_src>
import jax
import jax.numpy as jnp
from jax import lax
from jax.experimental import pallas as pl
from jax.experimental.pallas import tpu as pltpu


def _round_up(x, m):
    return (x + m - 1) // m * m


def _make_kernel(*, tile, l_real, tiles_per_batch):
    halo = 16                       # rows each side; cumulative receptive field = 6
    le = tile + 2 * halo            # halo'd height of the input tile
    h0_h = tile + 6                 # conv0 output rows  (z rows [13, 13+h0_h))
    h1_h = tile + 2                 # conv1 output rows  (z rows [15, 15+h1_h))

    def kernel(xl_ref, xc_ref, xr_ref,
               w0_ref, w1_ref, w2_ref, wsc_ref, b_ref, out_ref):
        j = pl.program_id(0)
        jb = j % tiles_per_batch                  # tile index within its batch
        base = jb * tile - halo                   # batch-local row of z index 0

        # halo'd bf16 input  [left(16) | centre(tile) | right(16)]  (aligned concat)
        z = jnp.concatenate([xl_ref[...], xc_ref[...], xr_ref[...]], axis=0)

        def mask(v, h, off):
            # zero rows whose batch-local index is outside [0, L): this is exactly
            # the per-conv zero padding of the reference AND it neutralises
            # cross-batch / clamped halo reads.
            rows = lax.broadcasted_iota(jnp.int32, (h, 1), 0) + (base + off)
            ok = jnp.logical_and(rows >= 0, rows < l_real)
            return jnp.where(ok, v, 0.0)

        def conv(zb, w_ref, b_row, k, start, out_h):
            # 'same' conv as k accumulated MXU matmuls on static sublane slices of
            # the (already bf16) activation; f32 accumulation; fused bias + ReLU.
            acc = jnp.dot(zb[start:start + out_h, :], w_ref[0],
                          preferred_element_type=jnp.float32)
            for t in range(1, k):                               # static unroll
                acc = acc + jnp.dot(zb[start + t:start + t + out_h, :], w_ref[t],
                                    preferred_element_type=jnp.float32)
            return jnp.maximum(acc + b_row, 0.0)

        z = mask(z, le, 0)                                           # conv0 padding
        h0 = mask(conv(z, w0_ref, b_ref[0:1, :], 7, 10, h0_h), h0_h, 13)
        h0 = h0.astype(jnp.bfloat16)                                 # cast ONCE
        h1 = mask(conv(h0, w1_ref, b_ref[1:2, :], 5, 0, h1_h), h1_h, 15)
        h1 = h1.astype(jnp.bfloat16)                                 # cast ONCE
        main = conv(h1, w2_ref, b_ref[2:3, :], 3, 0, tile)           # centre rows

        # shortcut: 1x1 conv on the centre rows (bf16 matmul, f32 accumulate)
        sc = jnp.dot(xc_ref[...], wsc_ref[...],
                     preferred_element_type=jnp.float32) + b_ref[3:4, :]

        # Block_Alt: main + shortcut, no final ReLU.  Output is lane-dense.
        out_ref[...] = (main + sc).astype(out_ref.dtype)

    return kernel


def block_alt(x_ncl, params, *, max_tile=None):
    """x_ncl: (B, Cin, L) float32 (PyTorch NCL). Returns (B, Cout, L) float32."""
    B, Cin, L = x_ncl.shape
    Cout = params["w0"].shape[0]

    Cinp = _round_up(Cin, 128)                   # lane-dense channels
    Coutp = _round_up(Cout, 128)

    # --- generation-aware tile sizing -------------------------------------------
    try:
        vmem_cap = pltpu.get_tpu_info().vmem_capacity_bytes
    except Exception:
        vmem_cap = 64 * 1024 * 1024
    if max_tile is None:
        if vmem_cap >= 100 * 1024 * 1024:        # v5e / v6e (128 MiB VMEM)
            max_tile = 4096 if Coutp <= 256 else (2048 if Coutp <= 512 else 1024)
        else:                                    # v7x (64 MiB VMEM)
            max_tile = 1024 if Coutp <= 256 else 512
    max_tile = max(16, _round_up(max_tile, 16))

    # tile chosen to minimise Lp-L padding; must be a multiple of 16 (halo blocks)
    n_chunks = max(1, pl.cdiv(L, max_tile))
    tile = _round_up(pl.cdiv(L, n_chunks), 16)
    # v7x has 2 TensorCores: make sure the "parallel" grid has at least 2 steps.
    if B * pl.cdiv(L, tile) < 2 and tile > 16:
        tile = _round_up(pl.cdiv(tile, 2), 16)
    Lp = _round_up(L, tile)
    tpb = Lp // tile                              # tiles per batch
    n_steps = B * tpb                             # 1-D parallel grid (B folded in)

    # --- wrapper layout: NCL -> flat (B*Lp, Cinp) bf16, zero padded ---------------
    x = jnp.transpose(x_ncl, (0, 2, 1)).astype(jnp.float32)
    x = jnp.pad(x, ((0, 0), (0, Lp - L), (0, Cinp - Cin)))
    x = x.reshape(B * Lp, Cinp).astype(jnp.bfloat16)

    def prep_w(w_oik, cip, cop):                  # torch (O, I, K) -> (K, cip, cop) bf16
        O, I, K = w_oik.shape
        w = jnp.transpose(w_oik, (2, 1, 0))       # (K, I, O)
        w = jnp.pad(w, ((0, 0), (0, cip - I), (0, cop - O)))
        return w.astype(jnp.bfloat16)

    w0 = prep_w(params["w0"], Cinp, Coutp)        # (7, Cinp, Coutp)
    w1 = prep_w(params["w1"], Coutp, Coutp)       # (5, Coutp, Coutp)
    w2 = prep_w(params["w2"], Coutp, Coutp)       # (3, Coutp, Coutp)
    wsc = prep_w(params["wsc"], Cinp, Coutp)[0]   # (Cinp, Coutp)

    bias = jnp.zeros((8, Coutp), jnp.float32)     # rows 0..3 = b0, b1, b2, bsc
    for r_, k_ in enumerate(("b0", "b1", "b2", "bsc")):
        b = params[k_].astype(jnp.float32)
        bias = bias.at[r_, :b.shape[0]].set(b)

    r = tile // 16                                # 16-row blocks per tile
    last_blk = (B * Lp) // 16 - 1                 # clamp for the last right halo
    kernel = _make_kernel(tile=tile, l_real=L, tiles_per_batch=tpb)

    def wspec(shape):                             # resident weights: single-buffered
        return pl.BlockSpec(shape, lambda j: (0,) * len(shape),
                            pipeline_mode=pl.Buffered(1))

    # --- explicit VMEM budget (weights single-buffered + pipelined I/O + temps) ---
    wbytes = 2 * Coutp * (7 * Cinp + 5 * Coutp + 3 * Coutp + Cinp) + 4 * 8 * Coutp
    iobytes = 2 * 2 * (tile + 32) * Cinp + 2 * 4 * tile * Coutp
    tmpbytes = (tile + 32) * (2 * Cinp + 12 * Coutp) * 4
    need = (wbytes + iobytes + tmpbytes) * 3 // 2
    vmem_limit = int(min(max(need, 32 * 1024 * 1024), vmem_cap * 3 // 4))

    out_flat = pl.pallas_call(
        kernel,
        out_shape=jax.ShapeDtypeStruct((B * Lp, Coutp), jnp.float32),
        grid_spec=pltpu.PrefetchScalarGridSpec(
            num_scalar_prefetch=0,
            grid=(n_steps,),
            in_specs=[
                # three views of the SAME input array: 16-row halos + centre tile
                pl.BlockSpec((16, Cinp), lambda j: (jnp.maximum(j * r - 1, 0), 0)),
                pl.BlockSpec((tile, Cinp), lambda j: (j, 0)),
                pl.BlockSpec((16, Cinp),
                             lambda j: (jnp.minimum((j + 1) * r, last_blk), 0)),
                # weights / packed biases: constant index maps, single-buffered
                wspec((7, Cinp, Coutp)),
                wspec((5, Coutp, Coutp)),
                wspec((3, Coutp, Coutp)),
                wspec((Cinp, Coutp)),
                wspec((8, Coutp)),
            ],
            out_specs=pl.BlockSpec((tile, Coutp), lambda j: (j, 0)),  # lane-dense
        ),
        compiler_params=pltpu.CompilerParams(
            dimension_semantics=("parallel",),
            vmem_limit_bytes=vmem_limit),
    )(x, x, x, w0, w1, w2, wsc, bias)

    out = out_flat.reshape(B, Lp, Coutp)[:, :L, :Cout]
    return jnp.transpose(out, (0, 2, 1))          # back to NCL


def block_alt_ref(x, p):
    """Pure-JAX reference (NCL layout), mirrors the PyTorch Block_Alt module."""
    def conv(h, w, b, pad):
        y = lax.conv_general_dilated(h, w, (1,), [(pad, pad)],
                                     dimension_numbers=("NCH", "OIH", "NCH"))
        return y + b[None, :, None]
    h = jax.nn.relu(conv(x, p["w0"], p["b0"], 3))
    h = jax.nn.relu(conv(h, p["w1"], p["b1"], 2))
    h = jax.nn.relu(conv(h, p["w2"], p["b2"], 1))
    sc = conv(x, p["wsc"], p["bsc"], 0)
    return h + sc                                  # no final ReLU in Block_Alt


if __name__ == "__main__":
    B, Cin, Cout, L = 2, 4, 8, 40                  # L % 16 != 0 -> ragged last tile
    key = jax.random.PRNGKey(0)
    ks = jax.random.split(key, 9)

    # Deterministic synthetic parameters (PyTorch weight layout: (Cout, Cin, K)).
    params = {
        "w0": 0.1 * jax.random.normal(ks[0], (Cout, Cin, 7), jnp.float32),
        "b0": 0.1 * jax.random.normal(ks[1], (Cout,), jnp.float32),
        "w1": 0.1 * jax.random.normal(ks[2], (Cout, Cout, 5), jnp.float32),
        "b1": 0.1 * jax.random.normal(ks[3], (Cout,), jnp.float32),
        "w2": 0.1 * jax.random.normal(ks[4], (Cout, Cout, 3), jnp.float32),
        "b2": 0.1 * jax.random.normal(ks[5], (Cout,), jnp.float32),
        "wsc": 0.1 * jax.random.normal(ks[6], (Cout, Cin, 1), jnp.float32),
        "bsc": 0.1 * jax.random.normal(ks[7], (Cout,), jnp.float32),
    }
    x = jax.random.normal(ks[8], (B, Cin, L), jnp.float32)
    ref = block_alt_ref(x, params)

    # (a) forced multi-tile, ragged path: exercises halos + cross-batch row masks
    out_a = jax.jit(lambda a, p: block_alt(a, p, max_tile=16))(x, params)
    jax.block_until_ready(out_a)
    # (b) default generation-aware tiling (single tile per batch at this size)
    out_b = jax.jit(lambda a, p: block_alt(a, p))(x, params)
    jax.block_until_ready(out_b)

    for out in (out_a, out_b):
        assert out.shape == (B, Cout, L), out.shape
        max_err = float(jnp.max(jnp.abs(out - ref)))
        # bf16 matmul operands with f32 accumulation -> slightly looser tolerance.
        assert jnp.allclose(out, ref, atol=3e-2, rtol=3e-2), max_err
    print("KERNEL_OK")
</pallas_src>

<mosaic_0001>
module attributes {stable_mosaic.version = 11 : i64} {
  func.func @kernel(%arg0: i32, %arg1: memref<16x128xbf16, #tpu.memory_space<vmem>>, %arg2: memref<16x128xbf16, #tpu.memory_space<vmem>>, %arg3: memref<16x128xbf16, #tpu.memory_space<vmem>>, %arg4: memref<7x128x128xbf16, #tpu.memory_space<vmem>>, %arg5: memref<5x128x128xbf16, #tpu.memory_space<vmem>>, %arg6: memref<3x128x128xbf16, #tpu.memory_space<vmem>>, %arg7: memref<128x128xbf16, #tpu.memory_space<vmem>>, %arg8: memref<8x128xf32, #tpu.memory_space<vmem>>, %arg9: memref<16x128xf32, #tpu.memory_space<vmem>>) attributes {dimension_semantics = [#tpu.dimension_semantics<parallel>], iteration_bounds = array<i64: 6>, scalar_prefetch = 0 : i64, scratch_operands = 0 : i64, tpu.core_type = #tpu.core_type<tc>, window_params = [{transform_indices = @transform_0, window_bounds = array<i64: 16, 128>}, {transform_indices = @transform_1, window_bounds = array<i64: 16, 128>}, {transform_indices = @transform_2, window_bounds = array<i64: 16, 128>}, {pipeline_mode = #tpu.pipeline_mode<synchronous>, transform_indices = @transform_3, window_bounds = array<i64: 7, 128, 128>}, {pipeline_mode = #tpu.pipeline_mode<synchronous>, transform_indices = @transform_4, window_bounds = array<i64: 5, 128, 128>}, {pipeline_mode = #tpu.pipeline_mode<synchronous>, transform_indices = @transform_5, window_bounds = array<i64: 3, 128, 128>}, {pipeline_mode = #tpu.pipeline_mode<synchronous>, transform_indices = @transform_6, window_bounds = array<i64: 128, 128>}, {pipeline_mode = #tpu.pipeline_mode<synchronous>, transform_indices = @transform_7, window_bounds = array<i64: 8, 128>}, {transform_indices = @transform_8, window_bounds = array<i64: 16, 128>}]} {
    %c3_i32 = arith.constant 3 : i32
    %c0_i32 = arith.constant 0 : i32
    %0 = arith.cmpi eq, %c3_i32, %c0_i32 : i32
    %c1_i32 = arith.constant 1 : i32
    %1 = arith.select %0, %c1_i32, %c3_i32 : i32
    %2 = arith.remsi %arg0, %1 : i32
    %c0_i32_0 = arith.constant 0 : i32
    %3 = arith.cmpi ne, %2, %c0_i32_0 : i32
    %c0_i32_1 = arith.constant 0 : i32
    %4 = arith.cmpi slt, %2, %c0_i32_1 : i32
    %c0_i32_2 = arith.constant 0 : i32
    %5 = arith.cmpi slt, %1, %c0_i32_2 : i32
    %6 = arith.xori %4, %5 : i1
    %7 = arith.andi %6, %3 : i1
    %8 = arith.addi %2, %1 : i32
    %9 = arith.select %7, %8, %2 : i32
    %c16_i32 = arith.constant 16 : i32
    %10 = arith.muli %9, %c16_i32 : i32
    %c16_i32_3 = arith.constant 16 : i32
    %11 = arith.subi %10, %c16_i32_3 : i32
    %c0 = arith.constant 0 : index
    %c0_4 = arith.constant 0 : index
    %12 = vector.load %arg1[%c0, %c0_4] : memref<16x128xbf16, #tpu.memory_space<vmem>>, vector<16x128xbf16>
    %c0_5 = arith.constant 0 : index
    %c0_6 = arith.constant 0 : index
    %13 = vector.load %arg2[%c0_5, %c0_6] : memref<16x128xbf16, #tpu.memory_space<vmem>>, vector<16x128xbf16>
    %c0_7 = arith.constant 0 : index
    %c0_8 = arith.constant 0 : index
    %14 = vector.load %arg3[%c0_7, %c0_8] : memref<16x128xbf16, #tpu.memory_space<vmem>>, vector<16x128xbf16>
    %15 = tpu.concatenate %12, %13, %14 in 0 : vector<16x128xbf16>, vector<16x128xbf16>, vector<16x128xbf16> -> vector<48x128xbf16>
    %16 = tpu.iota {dimensions = array<i32: 0>} : vector<48x1xi32>
    %c0_i32_9 = arith.constant 0 : i32
    %17 = arith.addi %11, %c0_i32_9 : i32
    %18 = vector.broadcast %17 : i32 to vector<48x1xi32>
    %19 = arith.addi %16, %18 : vector<48x1xi32>
    %c0_i32_10 = arith.constant 0 : i32
    %20 = vector.broadcast %c0_i32_10 : i32 to vector<48x1xi32>
    %21 = arith.cmpi sge, %19, %20 : vector<48x1xi32>
    %c40_i32 = arith.constant 40 : i32
    %22 = vector.broadcast %c40_i32 : i32 to vector<48x1xi32>
    %23 = arith.cmpi slt, %19, %22 : vector<48x1xi32>
    %24 = arith.andi %21, %23 : vector<48x1xi1>
    %cst = arith.constant 0.000000e+00 : f32
    %25 = arith.truncf %cst : f32 to bf16
    %26 = vector.shape_cast %24 : vector<48x1xi1> to vector<48x1xi1>
    %27 = vector.broadcast %26 : vector<48x1xi1> to vector<48x128xi1>
    %28 = vector.broadcast %25 : bf16 to vector<48x128xbf16>
    %29 = arith.select %27, %15, %28 : vector<48x128xi1>, vector<48x128xbf16>
    %c0_11 = arith.constant 0 : index
    %c0_12 = arith.constant 0 : index
    %30 = vector.load %arg8[%c0_11, %c0_12] : memref<8x128xf32, #tpu.memory_space<vmem>>, vector<1x128xf32>
    %31 = vector.extract_strided_slice %29 {offsets = [10, 0], sizes = [22, 128], strides = [1, 1]} : vector<48x128xbf16> to vector<22x128xbf16>
    %c0_13 = arith.constant 0 : index
    %c0_14 = arith.constant 0 : index
    %c0_15 = arith.constant 0 : index
    %32 = vector.load %arg4[%c0_13, %c0_14, %c0_15] : memref<7x128x128xbf16, #tpu.memory_space<vmem>>, vector<1x128x128xbf16>
    %33 = vector.shape_cast %32 : vector<1x128x128xbf16> to vector<128x128xbf16>
    %cst_16 = arith.constant dense<0.000000e+00> : vector<22x128xf32>
    %34 = tpu.matmul %31, %33, %cst_16 {dimension_numbers = #tpu.dot_dimension_numbers<[1], [0], [0], [1], [0, 0, 1, 1], [], []>} : vector<22x128xbf16>, vector<128x128xbf16>, vector<22x128xf32> -> vector<22x128xf32>
    %35 = vector.extract_strided_slice %29 {offsets = [11, 0], sizes = [22, 128], strides = [1, 1]} : vector<48x128xbf16> to vector<22x128xbf16>
    %c1 = arith.constant 1 : index
    %c0_17 = arith.constant 0 : index
    %c0_18 = arith.constant 0 : index
    %36 = vector.load %arg4[%c1, %c0_17, %c0_18] : memref<7x128x128xbf16, #tpu.memory_space<vmem>>, vector<1x128x128xbf16>
    %37 = vector.shape_cast %36 : vector<1x128x128xbf16> to vector<128x128xbf16>
    %cst_19 = arith.constant dense<0.000000e+00> : vector<22x128xf32>
    %38 = tpu.matmul %35, %37, %cst_19 {dimension_numbers = #tpu.dot_dimension_numbers<[1], [0], [0], [1], [0, 0, 1, 1], [], []>} : vector<22x128xbf16>, vector<128x128xbf16>, vector<22x128xf32> -> vector<22x128xf32>
    %39 = arith.addf %34, %38 : vector<22x128xf32>
    %40 = vector.extract_strided_slice %29 {offsets = [12, 0], sizes = [22, 128], strides = [1, 1]} : vector<48x128xbf16> to vector<22x128xbf16>
    %c2 = arith.constant 2 : index
    %c0_20 = arith.constant 0 : index
    %c0_21 = arith.constant 0 : index
    %41 = vector.load %arg4[%c2, %c0_20, %c0_21] : memref<7x128x128xbf16, #tpu.memory_space<vmem>>, vector<1x128x128xbf16>
    %42 = vector.shape_cast %41 : vector<1x128x128xbf16> to vector<128x128xbf16>
    %cst_22 = arith.constant dense<0.000000e+00> : vector<22x128xf32>
    %43 = tpu.matmul %40, %42, %cst_22 {dimension_numbers = #tpu.dot_dimension_numbers<[1], [0], [0], [1], [0, 0, 1, 1], [], []>} : vector<22x128xbf16>, vector<128x128xbf16>, vector<22x128xf32> -> vector<22x128xf32>
    %44 = arith.addf %39, %43 : vector<22x128xf32>
    %45 = vector.extract_strided_slice %29 {offsets = [13, 0], sizes = [22, 128], strides = [1, 1]} : vector<48x128xbf16> to vector<22x128xbf16>
    %c3 = arith.constant 3 : index
    %c0_23 = arith.constant 0 : index
    %c0_24 = arith.constant 0 : index
    %46 = vector.load %arg4[%c3, %c0_23, %c0_24] : memref<7x128x128xbf16, #tpu.memory_space<vmem>>, vector<1x128x128xbf16>
    %47 = vector.shape_cast %46 : vector<1x128x128xbf16> to vector<128x128xbf16>
    %cst_25 = arith.constant dense<0.000000e+00> : vector<22x128xf32>
    %48 = tpu.matmul %45, %47, %cst_25 {dimension_numbers = #tpu.dot_dimension_numbers<[1], [0], [0], [1], [0, 0, 1, 1], [], []>} : vector<22x128xbf16>, vector<128x128xbf16>, vector<22x128xf32> -> vector<22x128xf32>
    %49 = arith.addf %44, %48 : vector<22x128xf32>
    %50 = vector.extract_strided_slice %29 {offsets = [14, 0], sizes = [22, 128], strides = [1, 1]} : vector<48x128xbf16> to vector<22x128xbf16>
    %c4 = arith.constant 4 : index
    %c0_26 = arith.constant 0 : index
    %c0_27 = arith.constant 0 : index
    %51 = vector.load %arg4[%c4, %c0_26, %c0_27] : memref<7x128x128xbf16, #tpu.memory_space<vmem>>, vector<1x128x128xbf16>
    %52 = vector.shape_cast %51 : vector<1x128x128xbf16> to vector<128x128xbf16>
    %cst_28 = arith.constant dense<0.000000e+00> : vector<22x128xf32>
    %53 = tpu.matmul %50, %52, %cst_28 {dimension_numbers = #tpu.dot_dimension_numbers<[1], [0], [0], [1], [0, 0, 1, 1], [], []>} : vector<22x128xbf16>, vector<128x128xbf16>, vector<22x128xf32> -> vector<22x128xf32>
    %54 = arith.addf %49, %53 : vector<22x128xf32>
    %55 = vector.extract_strided_slice %29 {offsets = [15, 0], sizes = [22, 128], strides = [1, 1]} : vector<48x128xbf16> to vector<22x128xbf16>
    %c5 = arith.constant 5 : index
    %c0_29 = arith.constant 0 : index
    %c0_30 = arith.constant 0 : index
    %56 = vector.load %arg4[%c5, %c0_29, %c0_30] : memref<7x128x128xbf16, #tpu.memory_space<vmem>>, vector<1x128x128xbf16>
    %57 = vector.shape_cast %56 : vector<1x128x128xbf16> to vector<128x128xbf16>
    %cst_31 = arith.constant dense<0.000000e+00> : vector<22x128xf32>
    %58 = tpu.matmul %55, %57, %cst_31 {dimension_numbers = #tpu.dot_dimension_numbers<[1], [0], [0], [1], [0, 0, 1, 1], [], []>} : vector<22x128xbf16>, vector<128x128xbf16>, vector<22x128xf32> -> vector<22x128xf32>
    %59 = arith.addf %54, %58 : vector<22x128xf32>
    %60 = vector.extract_strided_slice %29 {offsets = [16, 0], sizes = [22, 128], strides = [1, 1]} : vector<48x128xbf16> to vector<22x128xbf16>
    %c6 = arith.constant 6 : index
    %c0_32 = arith.constant 0 : index
    %c0_33 = arith.constant 0 : index
    %61 = vector.load %arg4[%c6, %c0_32, %c0_33] : memref<7x128x128xbf16, #tpu.memory_space<vmem>>, vector<1x128x128xbf16>
    %62 = vector.shape_cast %61 : vector<1x128x128xbf16> to vector<128x128xbf16>
    %cst_34 = arith.constant dense<0.000000e+00> : vector<22x128xf32>
    %63 = tpu.matmul %60, %62, %cst_34 {dimension_numbers = #tpu.dot_dimension_numbers<[1], [0], [0], [1], [0, 0, 1, 1], [], []>} : vector<22x128xbf16>, vector<128x128xbf16>, vector<22x128xf32> -> vector<22x128xf32>
    %64 = arith.addf %59, %63 : vector<22x128xf32>
    %65 = vector.broadcast %30 : vector<1x128xf32> to vector<22x128xf32>
    %66 = arith.addf %64, %65 : vector<22x128xf32>
    %cst_35 = arith.constant 0.000000e+00 : f32
    %67 = vector.broadcast %cst_35 : f32 to vector<22x128xf32>
    %68 = arith.maximumf %66, %67 : vector<22x128xf32>
    %69 = tpu.iota {dimensions = array<i32: 0>} : vector<22x1xi32>
    %c13_i32 = arith.constant 13 : i32
    %70 = arith.addi %11, %c13_i32 : i32
    %71 = vector.broadcast %70 : i32 to vector<22x1xi32>
    %72 = arith.addi %69, %71 : vector<22x1xi32>
    %c0_i32_36 = arith.constant 0 : i32
    %73 = vector.broadcast %c0_i32_36 : i32 to vector<22x1xi32>
    %74 = arith.cmpi sge, %72, %73 : vector<22x1xi32>
    %c40_i32_37 = arith.constant 40 : i32
    %75 = vector.broadcast %c40_i32_37 : i32 to vector<22x1xi32>
    %76 = arith.cmpi slt, %72, %75 : vector<22x1xi32>
    %77 = arith.andi %74, %76 : vector<22x1xi1>
    %cst_38 = arith.constant 0.000000e+00 : f32
    %78 = vector.shape_cast %77 : vector<22x1xi1> to vector<22x1xi1>
    %79 = vector.broadcast %78 : vector<22x1xi1> to vector<22x128xi1>
    %80 = vector.broadcast %cst_38 : f32 to vector<22x128xf32>
    %81 = arith.select %79, %68, %80 : vector<22x128xi1>, vector<22x128xf32>
    %82 = arith.truncf %81 : vector<22x128xf32> to vector<22x128xbf16>
    %c1_39 = arith.constant 1 : index
    %c0_40 = arith.constant 0 : index
    %83 = vector.load %arg8[%c1_39, %c0_40] : memref<8x128xf32, #tpu.memory_space<vmem>>, vector<1x128xf32>
    %84 = vector.extract_strided_slice %82 {offsets = [0, 0], sizes = [18, 128], strides = [1, 1]} : vector<22x128xbf16> to vector<18x128xbf16>
    %c0_41 = arith.constant 0 : index
    %c0_42 = arith.constant 0 : index
    %c0_43 = arith.constant 0 : index
    %85 = vector.load %arg5[%c0_41, %c0_42, %c0_43] : memref<5x128x128xbf16, #tpu.memory_space<vmem>>, vector<1x128x128xbf16>
    %86 = vector.shape_cast %85 : vector<1x128x128xbf16> to vector<128x128xbf16>
    %cst_44 = arith.constant dense<0.000000e+00> : vector<18x128xf32>
    %87 = tpu.matmul %84, %86, %cst_44 {dimension_numbers = #tpu.dot_dimension_numbers<[1], [0], [0], [1], [0, 0, 1, 1], [], []>} : vector<18x128xbf16>, vector<128x128xbf16>, vector<18x128xf32> -> vector<18x128xf32>
    %88 = vector.extract_strided_slice %82 {offsets = [1, 0], sizes = [18, 128], strides = [1, 1]} : vector<22x128xbf16> to vector<18x128xbf16>
    %c1_45 = arith.constant 1 : index
    %c0_46 = arith.constant 0 : index
    %c0_47 = arith.constant 0 : index
    %89 = vector.load %arg5[%c1_45, %c0_46, %c0_47] : memref<5x128x128xbf16, #tpu.memory_space<vmem>>, vector<1x128x128xbf16>
    %90 = vector.shape_cast %89 : vector<1x128x128xbf16> to vector<128x128xbf16>
    %cst_48 = arith.constant dense<0.000000e+00> : vector<18x128xf32>
    %91 = tpu.matmul %88, %90, %cst_48 {dimension_numbers = #tpu.dot_dimension_numbers<[1], [0], [0], [1], [0, 0, 1, 1], [], []>} : vector<18x128xbf16>, vector<128x128xbf16>, vector<18x128xf32> -> vector<18x128xf32>
    %92 = arith.addf %87, %91 : vector<18x128xf32>
    %93 = vector.extract_strided_slice %82 {offsets = [2, 0], sizes = [18, 128], strides = [1, 1]} : vector<22x128xbf16> to vector<18x128xbf16>
    %c2_49 = arith.constant 2 : index
    %c0_50 = arith.constant 0 : index
    %c0_51 = arith.constant 0 : index
    %94 = vector.load %arg5[%c2_49, %c0_50, %c0_51] : memref<5x128x128xbf16, #tpu.memory_space<vmem>>, vector<1x128x128xbf16>
    %95 = vector.shape_cast %94 : vector<1x128x128xbf16> to vector<128x128xbf16>
    %cst_52 = arith.constant dense<0.000000e+00> : vector<18x128xf32>
    %96 = tpu.matmul %93, %95, %cst_52 {dimension_numbers = #tpu.dot_dimension_numbers<[1], [0], [0], [1], [0, 0, 1, 1], [], []>} : vector<18x128xbf16>, vector<128x128xbf16>, vector<18x128xf32> -> vector<18x128xf32>
    %97 = arith.addf %92, %96 : vector<18x128xf32>
    %98 = vector.extract_strided_slice %82 {offsets = [3, 0], sizes = [18, 128], strides = [1, 1]} : vector<22x128xbf16> to vector<18x128xbf16>
    %c3_53 = arith.constant 3 : index
    %c0_54 = arith.constant 0 : index
    %c0_55 = arith.constant 0 : index
    %99 = vector.load %arg5[%c3_53, %c0_54, %c0_55] : memref<5x128x128xbf16, #tpu.memory_space<vmem>>, vector<1x128x128xbf16>
    %100 = vector.shape_cast %99 : vector<1x128x128xbf16> to vector<128x128xbf16>
    %cst_56 = arith.constant dense<0.000000e+00> : vector<18x128xf32>
    %101 = tpu.matmul %98, %100, %cst_56 {dimension_numbers = #tpu.dot_dimension_numbers<[1], [0], [0], [1], [0, 0, 1, 1], [], []>} : vector<18x128xbf16>, vector<128x128xbf16>, vector<18x128xf32> -> vector<18x128xf32>
    %102 = arith.addf %97, %101 : vector<18x128xf32>
    %103 = vector.extract_strided_slice %82 {offsets = [4, 0], sizes = [18, 128], strides = [1, 1]} : vector<22x128xbf16> to vector<18x128xbf16>
    %c4_57 = arith.constant 4 : index
    %c0_58 = arith.constant 0 : index
    %c0_59 = arith.constant 0 : index
    %104 = vector.load %arg5[%c4_57, %c0_58, %c0_59] : memref<5x128x128xbf16, #tpu.memory_space<vmem>>, vector<1x128x128xbf16>
    %105 = vector.shape_cast %104 : vector<1x128x128xbf16> to vector<128x128xbf16>
    %cst_60 = arith.constant dense<0.000000e+00> : vector<18x128xf32>
    %106 = tpu.matmul %103, %105, %cst_60 {dimension_numbers = #tpu.dot_dimension_numbers<[1], [0], [0], [1], [0, 0, 1, 1], [], []>} : vector<18x128xbf16>, vector<128x128xbf16>, vector<18x128xf32> -> vector<18x128xf32>
    %107 = arith.addf %102, %106 : vector<18x128xf32>
    %108 = vector.broadcast %83 : vector<1x128xf32> to vector<18x128xf32>
    %109 = arith.addf %107, %108 : vector<18x128xf32>
    %cst_61 = arith.constant 0.000000e+00 : f32
    %110 = vector.broadcast %cst_61 : f32 to vector<18x128xf32>
    %111 = arith.maximumf %109, %110 : vector<18x128xf32>
    %112 = tpu.iota {dimensions = array<i32: 0>} : vector<18x1xi32>
    %c15_i32 = arith.constant 15 : i32
    %113 = arith.addi %11, %c15_i32 : i32
    %114 = vector.broadcast %113 : i32 to vector<18x1xi32>
    %115 = arith.addi %112, %114 : vector<18x1xi32>
    %c0_i32_62 = arith.constant 0 : i32
    %116 = vector.broadcast %c0_i32_62 : i32 to vector<18x1xi32>
    %117 = arith.cmpi sge, %115, %116 : vector<18x1xi32>
    %c40_i32_63 = arith.constant 40 : i32
    %118 = vector.broadcast %c40_i32_63 : i32 to vector<18x1xi32>
    %119 = arith.cmpi slt, %115, %118 : vector<18x1xi32>
    %120 = arith.andi %117, %119 : vector<18x1xi1>
    %cst_64 = arith.constant 0.000000e+00 : f32
    %121 = vector.shape_cast %120 : vector<18x1xi1> to vector<18x1xi1>
    %122 = vector.broadcast %121 : vector<18x1xi1> to vector<18x128xi1>
    %123 = vector.broadcast %cst_64 : f32 to vector<18x128xf32>
    %124 = arith.select %122, %111, %123 : vector<18x128xi1>, vector<18x128xf32>
    %125 = arith.truncf %124 : vector<18x128xf32> to vector<18x128xbf16>
    %c2_65 = arith.constant 2 : index
    %c0_66 = arith.constant 0 : index
    %126 = vector.load %arg8[%c2_65, %c0_66] : memref<8x128xf32, #tpu.memory_space<vmem>>, vector<1x128xf32>
    %127 = vector.extract_strided_slice %125 {offsets = [0, 0], sizes = [16, 128], strides = [1, 1]} : vector<18x128xbf16> to vector<16x128xbf16>
    %c0_67 = arith.constant 0 : index
    %c0_68 = arith.constant 0 : index
    %c0_69 = arith.constant 0 : index
    %128 = vector.load %arg6[%c0_67, %c0_68, %c0_69] : memref<3x128x128xbf16, #tpu.memory_space<vmem>>, vector<1x128x128xbf16>
    %129 = vector.shape_cast %128 : vector<1x128x128xbf16> to vector<128x128xbf16>
    %cst_70 = arith.constant dense<0.000000e+00> : vector<16x128xf32>
    %130 = tpu.matmul %127, %129, %cst_70 {dimension_numbers = #tpu.dot_dimension_numbers<[1], [0], [0], [1], [0, 0, 1, 1], [], []>} : vector<16x128xbf16>, vector<128x128xbf16>, vector<16x128xf32> -> vector<16x128xf32>
    %131 = vector.extract_strided_slice %125 {offsets = [1, 0], sizes = [16, 128], strides = [1, 1]} : vector<18x128xbf16> to vector<16x128xbf16>
    %c1_71 = arith.constant 1 : index
    %c0_72 = arith.constant 0 : index
    %c0_73 = arith.constant 0 : index
    %132 = vector.load %arg6[%c1_71, %c0_72, %c0_73] : memref<3x128x128xbf16, #tpu.memory_space<vmem>>, vector<1x128x128xbf16>
    %133 = vector.shape_cast %132 : vector<1x128x128xbf16> to vector<128x128xbf16>
    %cst_74 = arith.constant dense<0.000000e+00> : vector<16x128xf32>
    %134 = tpu.matmul %131, %133, %cst_74 {dimension_numbers = #tpu.dot_dimension_numbers<[1], [0], [0], [1], [0, 0, 1, 1], [], []>} : vector<16x128xbf16>, vector<128x128xbf16>, vector<16x128xf32> -> vector<16x128xf32>
    %135 = arith.addf %130, %134 : vector<16x128xf32>
    %136 = vector.extract_strided_slice %125 {offsets = [2, 0], sizes = [16, 128], strides = [1, 1]} : vector<18x128xbf16> to vector<16x128xbf16>
    %c2_75 = arith.constant 2 : index
    %c0_76 = arith.constant 0 : index
    %c0_77 = arith.constant 0 : index
    %137 = vector.load %arg6[%c2_75, %c0_76, %c0_77] : memref<3x128x128xbf16, #tpu.memory_space<vmem>>, vector<1x128x128xbf16>
    %138 = vector.shape_cast %137 : vector<1x128x128xbf16> to vector<128x128xbf16>
    %cst_78 = arith.constant dense<0.000000e+00> : vector<16x128xf32>
    %139 = tpu.matmul %136, %138, %cst_78 {dimension_numbers = #tpu.dot_dimension_numbers<[1], [0], [0], [1], [0, 0, 1, 1], [], []>} : vector<16x128xbf16>, vector<128x128xbf16>, vector<16x128xf32> -> vector<16x128xf32>
    %140 = arith.addf %135, %139 : vector<16x128xf32>
    %141 = vector.broadcast %126 : vector<1x128xf32> to vector<16x128xf32>
    %142 = arith.addf %140, %141 : vector<16x128xf32>
    %cst_79 = arith.constant 0.000000e+00 : f32
    %143 = vector.broadcast %cst_79 : f32 to vector<16x128xf32>
    %144 = arith.maximumf %142, %143 : vector<16x128xf32>
    %c0_80 = arith.constant 0 : index
    %c0_81 = arith.constant 0 : index
    %145 = vector.load %arg2[%c0_80, %c0_81] : memref<16x128xbf16, #tpu.memory_space<vmem>>, vector<16x128xbf16>
    %c0_82 = arith.constant 0 : index
    %c0_83 = arith.constant 0 : index
    %146 = vector.load %arg7[%c0_82, %c0_83] : memref<128x128xbf16, #tpu.memory_space<vmem>>, vector<128x128xbf16>
    %cst_84 = arith.constant dense<0.000000e+00> : vector<16x128xf32>
    %147 = tpu.matmul %145, %146, %cst_84 {dimension_numbers = #tpu.dot_dimension_numbers<[1], [0], [0], [1], [0, 0, 1, 1], [], []>} : vector<16x128xbf16>, vector<128x128xbf16>, vector<16x128xf32> -> vector<16x128xf32>
    %c3_85 = arith.constant 3 : index
    %c0_86 = arith.constant 0 : index
    %148 = vector.load %arg8[%c3_85, %c0_86] : memref<8x128xf32, #tpu.memory_space<vmem>>, vector<1x128xf32>
    %149 = vector.broadcast %148 : vector<1x128xf32> to vector<16x128xf32>
    %150 = arith.addf %147, %149 : vector<16x128xf32>
    %151 = arith.addf %144, %150 : vector<16x128xf32>
    %c0_87 = arith.constant 0 : index
    %c0_88 = arith.constant 0 : index
    %152 = vector.load %arg9[%c0_87, %c0_88] : memref<16x128xf32, #tpu.memory_space<vmem>>, vector<16x128xf32>
    tpu.vector_store %arg9[%c0_87, %c0_88], %151 {strides = array<i32>} : memref<16x128xf32, #tpu.memory_space<vmem>>, vector<16x128xf32>,
    return
  }
  func.func @transform_0(%arg0: i32) -> (i32, i32) {
    %c1_i32 = arith.constant 1 : i32
    %0 = arith.muli %arg0, %c1_i32 : i32
    %c1_i32_0 = arith.constant 1 : i32
    %1 = arith.subi %0, %c1_i32_0 : i32
    %c0_i32 = arith.constant 0 : i32
    %2 = arith.maxsi %1, %c0_i32 : i32
    %c0_i32_1 = arith.constant 0 : i32
    %c0_i32_2 = arith.constant 0 : i32
    return %2, %c0_i32_1 : i32, i32
  }
  func.func @transform_1(%arg0: i32) -> (i32, i32) {
    %c0_i32 = arith.constant 0 : i32
    %c0_i32_0 = arith.constant 0 : i32
    return %arg0, %c0_i32 : i32, i32
  }
  func.func @transform_2(%arg0: i32) -> (i32, i32) {
    %c1_i32 = arith.constant 1 : i32
    %0 = arith.addi %arg0, %c1_i32 : i32
    %c1_i32_0 = arith.constant 1 : i32
    %1 = arith.muli %0, %c1_i32_0 : i32
    %c5_i32 = arith.constant 5 : i32
    %2 = arith.minsi %1, %c5_i32 : i32
    %c0_i32 = arith.constant 0 : i32
    %c0_i32_1 = arith.constant 0 : i32
    return %2, %c0_i32 : i32, i32
  }
  func.func @transform_3(%arg0: i32) -> (i32, i32, i32) {
    %c0_i32 = arith.constant 0 : i32
    %c0_i32_0 = arith.constant 0 : i32
    %c0_i32_1 = arith.constant 0 : i32
    %c0_i32_2 = arith.constant 0 : i32
    return %c0_i32, %c0_i32_0, %c0_i32_1 : i32, i32, i32
  }
  func.func @transform_4(%arg0: i32) -> (i32, i32, i32) {
    %c0_i32 = arith.constant 0 : i32
    %c0_i32_0 = arith.constant 0 : i32
    %c0_i32_1 = arith.constant 0 : i32
    %c0_i32_2 = arith.constant 0 : i32
    return %c0_i32, %c0_i32_0, %c0_i32_1 : i32, i32, i32
  }
  func.func @transform_5(%arg0: i32) -> (i32, i32, i32) {
    %c0_i32 = arith.constant 0 : i32
    %c0_i32_0 = arith.constant 0 : i32
    %c0_i32_1 = arith.constant 0 : i32
    %c0_i32_2 = arith.constant 0 : i32
    return %c0_i32, %c0_i32_0, %c0_i32_1 : i32, i32, i32
  }
  func.func @transform_6(%arg0: i32) -> (i32, i32) {
    %c0_i32 = arith.constant 0 : i32
    %c0_i32_0 = arith.constant 0 : i32
    %c0_i32_1 = arith.constant 0 : i32
    return %c0_i32, %c0_i32_0 : i32, i32
  }
  func.func @transform_7(%arg0: i32) -> (i32, i32) {
    %c0_i32 = arith.constant 0 : i32
    %c0_i32_0 = arith.constant 0 : i32
    %c0_i32_1 = arith.constant 0 : i32
    return %c0_i32, %c0_i32_0 : i32, i32
  }
  func.func @transform_8(%arg0: i32) -> (i32, i32) {
    %c0_i32 = arith.constant 0 : i32
    %c0_i32_0 = arith.constant 0 : i32
    return %arg0, %c0_i32 : i32, i32
  }
}

</mosaic_0001>

<llo_original>
// kernel: _lambda_.1
$region0: #{_lambda_.1}
  #allocation0 [shape = 'u32[]', space=smem, size = 0x4, offset = 0x4, fixed_abs, tag = 'smem constant byte address 0x4 - core index']
  #allocation1 [shape = 'u32[144,128]{1,0:T(1,128)}', space=vmem, size = 0x12000, scoped, tag = 'internal scratch']
  %s0 = inlined_call_operand.vmem [shape: bf16[96,128], index: 0, kind: input, shape index: {}, may-alias: {0,1,2}]
  %s1 = inlined_call_operand.vmem [shape: bf16[96,128], index: 1, kind: input, shape index: {}, may-alias: {0,1,2}]
  %s2 = inlined_call_operand.vmem [shape: bf16[96,128], index: 2, kind: input, shape index: {}, may-alias: {0,1,2}]
  %s3 = inlined_call_operand.vmem [shape: bf16[7,128,128], index: 3, kind: input, shape index: {}]
  %s4 = inlined_call_operand.vmem [shape: bf16[5,128,128], index: 4, kind: input, shape index: {}]
  %s5 = inlined_call_operand.vmem [shape: bf16[3,128,128], index: 5, kind: input, shape index: {}]
  %s6 = inlined_call_operand.vmem [shape: bf16[128,128], index: 6, kind: input, shape index: {}]
  %s7 = inlined_call_operand.vmem [shape: f32[8,128], index: 7, kind: input, shape index: {}]
  %s8 = inlined_call_operand.vmem [shape: f32[96,128], index: 8, kind: output, shape index: {}]
  %s9 = sld [smem:[#allocation0]]
  $region65: #{_lambda_.1} parent=0
    _
  %s11 = ssub.s32 1, %s9
  %s12 = scalar_select 0, %s11, %s9
  loop: start=0, step=1, limit=8
  $region2: #{_lambda_.1} parent=0 // loop_pre_header
    _
  $region3: #{_lambda_.1} parent=0 // loop_header
    %s14 = sphi 0, %s18
    %p15 = scmp.ge.s32.totalorder %s14, 8
    %s30 = sphi 0, %s32
    %s33 = sphi 0, %s30
    %s34 = sphi 0, %s33
    %s50 = sphi 0, %s34
    %s56 = sphi 0, %s58
    %s59 = sphi 0, %s56
    %s60 = sphi 0, %s59
    %s76 = sphi 0, %s60
    %s88 = sphi 0, %s90
    %s91 = sphi 0, %s88
    %s92 = sphi 0, %s91
    %s108 = sphi 0, %s92
    %s112 = sphi 0, %s112
    %s114 = sphi 0, %s112
    %s115 = sphi 0, %s114
    %s129 = sphi 0, %s115
    %s133 = sphi 0, %s133
    %s135 = sphi 0, %s133
    %s136 = sphi 0, %s135
    %s150 = sphi 0, %s136
    %s154 = sphi 0, %s154
    %s156 = sphi 0, %s154
    %s157 = sphi 0, %s156
    %s171 = sphi 0, %s157
    %s175 = sphi 0, %s175
    %s177 = sphi 0, %s175
    %s178 = sphi 0, %s177
    %s192 = sphi 0, %s178
    %s196 = sphi 0, %s196
    %s198 = sphi 0, %s196
    %s199 = sphi 0, %s198
    %s213 = sphi 0, %s199
    %s219 = sphi 0, %s221
    %s222 = sphi 0, %s219
    %s223 = sphi 0, %s222
    %s239 = sphi 0, %s223
  $region4: #{_lambda_.1} parent=0 // loop_header_branch
    %17 = sbr.rel (%p15) target = $region8
  $region5: #{_lambda_.1} parent=0 // loop_body
    %s19 = ssub.s32 %s14, 1
    %s20 = ssub.s32 %s14, 2
    %s21 = sadd.s32 %s14, 1
    %s22 = ssub.s32 %s14, 1
    %p23 = scmp.gt.s32.totalorder %s22, 0
    %s24 = scalar_select %p23, %s22, 0
    %s25 = ssub.s32 %s21, 1
    %p26 = scmp.gt.s32.totalorder %s25, 0
    %s27 = scalar_select %p26, %s25, 0
    %s28 = ssub.s32 %s24, %s27
    %p29 = scmp.eq.s32.totalorder %s28, 0
    %s31 = sadd.s32 %s30, 1
    %s32 = scalar_select %p29, %s30, %s31
    %p35 = pneg %p29
    %p36 = scmp.eq.s32.totalorder %s14, 5
    %p37 = por %p35, %p36
    %p38 = scmp.ne.s32.totalorder %s30, %s33
    %p39 = scmp.eq.s32.totalorder %s14, 0
    %p40 = por %p38, %p39
    %p41 = scmp.ne.s32.totalorder %s30, %s33
    %p42 = scmp.eq.s32.totalorder %s19, 5
    %p43 = por %p41, %p42
    %p44 = scmp.ne.s32.totalorder %s33, %s34
    %p45 = scmp.eq.s32.totalorder %s19, 0
    %p46 = por %p44, %p45
    %p47 = scmp.ne.s32.totalorder %s33, %s34
    %p48 = scmp.eq.s32.totalorder %s20, 5
    %p49 = por %p47, %p48
    %p51 = scmp.ne.s32.totalorder %s34, %s50
    %p52 = scmp.eq.s32.totalorder %s20, 0
    %p53 = por %p51, %p52
    %s54 = ssub.s32 %s14, %s21
    %p55 = scmp.eq.s32.totalorder %s54, 0
    %s57 = sadd.s32 %s56, 1
    %s58 = scalar_select %p55, %s56, %s57
    %p61 = pneg %p55
    %p62 = scmp.eq.s32.totalorder %s14, 5
    %p63 = por %p61, %p62
    %p64 = scmp.ne.s32.totalorder %s56, %s59
    %p65 = scmp.eq.s32.totalorder %s14, 0
    %p66 = por %p64, %p65
    %p67 = scmp.ne.s32.totalorder %s56, %s59
    %p68 = scmp.eq.s32.totalorder %s19, 5
    %p69 = por %p67, %p68
    %p70 = scmp.ne.s32.totalorder %s59, %s60
    %p71 = scmp.eq.s32.totalorder %s19, 0
    %p72 = por %p70, %p71
    %p73 = scmp.ne.s32.totalorder %s59, %s60
    %p74 = scmp.eq.s32.totalorder %s20, 5
    %p75 = por %p73, %p74
    %p77 = scmp.ne.s32.totalorder %s60, %s76
    %p78 = scmp.eq.s32.totalorder %s20, 0
    %p79 = por %p77, %p78
    %s80 = sadd.s32 %s14, 1
    %p81 = scmp.lt.s32.totalorder %s80, 5
    %s82 = scalar_select %p81, %s80, 5
    %s83 = sadd.s32 %s21, 1
    %p84 = scmp.lt.s32.totalorder %s83, 5
    %s85 = scalar_select %p84, %s83, 5
    %s86 = ssub.s32 %s82, %s85
    %p87 = scmp.eq.s32.totalorder %s86, 0
    %s89 = sadd.s32 %s88, 1
    %s90 = scalar_select %p87, %s88, %s89
    %p93 = pneg %p87
    %p94 = scmp.eq.s32.totalorder %s14, 5
    %p95 = por %p93, %p94
    %p96 = scmp.ne.s32.totalorder %s88, %s91
    %p97 = scmp.eq.s32.totalorder %s14, 0
    %p98 = por %p96, %p97
    %p99 = scmp.ne.s32.totalorder %s88, %s91
    %p100 = scmp.eq.s32.totalorder %s19, 5
    %p101 = por %p99, %p100
    %p102 = scmp.ne.s32.totalorder %s91, %s92
    %p103 = scmp.eq.s32.totalorder %s19, 0
    %p104 = por %p102, %p103
    %p105 = scmp.ne.s32.totalorder %s91, %s92
    %p106 = scmp.eq.s32.totalorder %s20, 5
    %p107 = por %p105, %p106
    %p109 = scmp.ne.s32.totalorder %s92, %s108
    %p110 = scmp.eq.s32.totalorder %s20, 0
    %p111 = por %p109, %p110
    %s113 = sadd.s32 %s112, 1
    %p116 = scmp.eq.s32.totalorder %s14, 5
    %p117 = scmp.ne.s32.totalorder %s112, %s114
    %p118 = scmp.eq.s32.totalorder %s14, 0
    %p119 = por %p117, %p118
    %p120 = scmp.ne.s32.totalorder %s112, %s114
    %p121 = scmp.eq.s32.totalorder %s19, 5
    %p122 = por %p120, %p121
    %p123 = scmp.ne.s32.totalorder %s114, %s115
    %p124 = scmp.eq.s32.totalorder %s19, 0
    %p125 = por %p123, %p124
    %p126 = scmp.ne.s32.totalorder %s114, %s115
    %p127 = scmp.eq.s32.totalorder %s20, 5
    %p128 = por %p126, %p127
    %p130 = scmp.ne.s32.totalorder %s115, %s129
    %p131 = scmp.eq.s32.totalorder %s20, 0
    %p132 = por %p130, %p131
    %s134 = sadd.s32 %s133, 1
    %p137 = scmp.eq.s32.totalorder %s14, 5
    %p138 = scmp.ne.s32.totalorder %s133, %s135
    %p139 = scmp.eq.s32.totalorder %s14, 0
    %p140 = por %p138, %p139
    %p141 = scmp.ne.s32.totalorder %s133, %s135
    %p142 = scmp.eq.s32.totalorder %s19, 5
    %p143 = por %p141, %p142
    %p144 = scmp.ne.s32.totalorder %s135, %s136
    %p145 = scmp.eq.s32.totalorder %s19, 0
    %p146 = por %p144, %p145
    %p147 = scmp.ne.s32.totalorder %s135, %s136
    %p148 = scmp.eq.s32.totalorder %s20, 5
    %p149 = por %p147, %p148
    %p151 = scmp.ne.s32.totalorder %s136, %s150
    %p152 = scmp.eq.s32.totalorder %s20, 0
    %p153 = por %p151, %p152
    %s155 = sadd.s32 %s154, 1
    %p158 = scmp.eq.s32.totalorder %s14, 5
    %p159 = scmp.ne.s32.totalorder %s154, %s156
    %p160 = scmp.eq.s32.totalorder %s14, 0
    %p161 = por %p159, %p160
    %p162 = scmp.ne.s32.totalorder %s154, %s156
    %p163 = scmp.eq.s32.totalorder %s19, 5
    %p164 = por %p162, %p163
    %p165 = scmp.ne.s32.totalorder %s156, %s157
    %p166 = scmp.eq.s32.totalorder %s19, 0
    %p167 = por %p165, %p166
    %p168 = scmp.ne.s32.totalorder %s156, %s157
    %p169 = scmp.eq.s32.totalorder %s20, 5
    %p170 = por %p168, %p169
    %p172 = scmp.ne.s32.totalorder %s157, %s171
    %p173 = scmp.eq.s32.totalorder %s20, 0
    %p174 = por %p172, %p173
    %s176 = sadd.s32 %s175, 1
    %p179 = scmp.eq.s32.totalorder %s14, 5
    %p180 = scmp.ne.s32.totalorder %s175, %s177
    %p181 = scmp.eq.s32.totalorder %s14, 0
    %p182 = por %p180, %p181
    %p183 = scmp.ne.s32.totalorder %s175, %s177
    %p184 = scmp.eq.s32.totalorder %s19, 5
    %p185 = por %p183, %p184
    %p186 = scmp.ne.s32.totalorder %s177, %s178
    %p187 = scmp.eq.s32.totalorder %s19, 0
    %p188 = por %p186, %p187
    %p189 = scmp.ne.s32.totalorder %s177, %s178
    %p190 = scmp.eq.s32.totalorder %s20, 5
    %p191 = por %p189, %p190
    %p193 = scmp.ne.s32.totalorder %s178, %s192
    %p194 = scmp.eq.s32.totalorder %s20, 0
    %p195 = por %p193, %p194
    %s197 = sadd.s32 %s196, 1
    %p200 = scmp.eq.s32.totalorder %s14, 5
    %p201 = scmp.ne.s32.totalorder %s196, %s198
    %p202 = scmp.eq.s32.totalorder %s14, 0
    %p203 = por %p201, %p202
    %p204 = scmp.ne.s32.totalorder %s196, %s198
    %p205 = scmp.eq.s32.totalorder %s19, 5
    %p206 = por %p204, %p205
    %p207 = scmp.ne.s32.totalorder %s198, %s199
    %p208 = scmp.eq.s32.totalorder %s19, 0
    %p209 = por %p207, %p208
    %p210 = scmp.ne.s32.totalorder %s198, %s199
    %p211 = scmp.eq.s32.totalorder %s20, 5
    %p212 = por %p210, %p211
    %p214 = scmp.ne.s32.totalorder %s199, %s213
    %p215 = scmp.eq.s32.totalorder %s20, 0
    %p216 = por %p214, %p215
    %s217 = ssub.s32 %s14, %s21
    %p218 = scmp.eq.s32.totalorder %s217, 0
    %s220 = sadd.s32 %s219, 1
    %s221 = scalar_select %p218, %s219, %s220
    %p224 = pneg %p218
    %p225 = scmp.eq.s32.totalorder %s14, 5
    %p226 = por %p224, %p225
    %p227 = scmp.ne.s32.totalorder %s219, %s222
    %p228 = scmp.eq.s32.totalorder %s14, 0
    %p229 = por %p227, %p228
    %p230 = scmp.ne.s32.totalorder %s219, %s222
    %p231 = scmp.eq.s32.totalorder %s19, 5
    %p232 = por %p230, %p231
    %p233 = scmp.ne.s32.totalorder %s222, %s223
    %p234 = scmp.eq.s32.totalorder %s19, 0
    %p235 = por %p233, %p234
    %p236 = scmp.ne.s32.totalorder %s222, %s223
    %p237 = scmp.eq.s32.totalorder %s20, 5
    %p238 = por %p236, %p237
    %p240 = scmp.ne.s32.totalorder %s223, %s239
    %p241 = scmp.eq.s32.totalorder %s20, 0
    %p242 = por %p240, %p241
    %p243 = scmp.le.s32.totalorder 1, %s14
    %p244 = scmp.lt.s32.totalorder %s14, 7
    %p245 = pnand %p243, %p244
    %p246 = pneg %p245
    // Predicated region
    $region9: #{_lambda_.1} parent=5 // pred_check
      _
    $region10: #{_lambda_.1} parent=5 // pred_check_branch
      %248 = sbr.rel (%p245) target = $region12
    $region11: #{_lambda_.1} parent=5 // pred_region
      %s249 = ssub.s32 %s14, 1
      // Predicated region
      $region13: #{_lambda_.1} parent=11 // pred_check
        %p250 = pneg %p125
      $region14: #{_lambda_.1} parent=11 // pred_check_branch
        %252 = sbr.rel (%p250) target = $region16
      $region15: #{_lambda_.1} parent=11 // pred_region
        _
      $region16: #{_lambda_.1} parent=11 // pred_fallthru
        _
      // Predicated region
      $region17: #{_lambda_.1} parent=11 // pred_check
        %p253 = pneg %p146
      $region18: #{_lambda_.1} parent=11 // pred_check_branch
        %255 = sbr.rel (%p253) target = $region20
      $region19: #{_lambda_.1} parent=11 // pred_region
        _
      $region20: #{_lambda_.1} parent=11 // pred_fallthru
        _
      // Predicated region
      $region21: #{_lambda_.1} parent=11 // pred_check
        %p256 = pneg %p167
      $region22: #{_lambda_.1} parent=11 // pred_check_branch
        %258 = sbr.rel (%p256) target = $region24
      $region23: #{_lambda_.1} parent=11 // pred_region
        _
      $region24: #{_lambda_.1} parent=11 // pred_fallthru
        _
      // Predicated region
      $region25: #{_lambda_.1} parent=11 // pred_check
        %p259 = pneg %p188
      $region26: #{_lambda_.1} parent=11 // pred_check_branch
        %261 = sbr.rel (%p259) target = $region28
      $region27: #{_lambda_.1} parent=11 // pred_region
        _
      $region28: #{_lambda_.1} parent=11 // pred_fallthru
        _
      // Predicated region
      $region29: #{_lambda_.1} parent=11 // pred_check
        %p262 = pneg %p209
      $region30: #{_lambda_.1} parent=11 // pred_check_branch
        %264 = sbr.rel (%p262) target = $region32
      $region31: #{_lambda_.1} parent=11 // pred_region
        _
      $region32: #{_lambda_.1} parent=11 // pred_fallthru
        _
    $region12: #{_lambda_.1} parent=5 // pred_fallthru
      _
    %p265 = scmp.lt.s32.totalorder %s14, 6
    // Predicated region
    $region33: #{_lambda_.1} parent=5 // pred_check
      %p266 = pneg %p265
    $region34: #{_lambda_.1} parent=5 // pred_check_branch
      %268 = sbr.rel (%p266) target = $region36
    $region35: #{_lambda_.1} parent=5 // pred_region
      // Predicated region
      $region37: #{_lambda_.1} parent=35 // pred_check
        %p269 = pneg %p40
      $region38: #{_lambda_.1} parent=35 // pred_check_branch
        %271 = sbr.rel (%p269) target = $region40
      $region39: #{_lambda_.1} parent=35 // pred_region
        %s272 = ssub.s32 %s14, 1
        %p273 = scmp.gt.s32.totalorder %s272, 0
        %s274 = scalar_select %p273, %s272, 0
        %s275 = smul.u32 2, %s274
        %p276 = scmp.lt.s32.totalorder %s275, 11
        %s277 = scalar_select %p276, %s275, 11
        %s278 = smul.addr %s277, 4
        %s279 = scalar_lea.vmem %s0, %s278
        %s280 = ssub.s32 %s14, 1
        %p281 = scmp.gt.s32.totalorder %s280, 0
        %s282 = scalar_select %p281, %s280, 0
        %s283 = smul.u32 2, %s282
      $region40: #{_lambda_.1} parent=35 // pred_fallthru
        _
      // Predicated region
      $region41: #{_lambda_.1} parent=35 // pred_check
        %p284 = pneg %p66
      $region42: #{_lambda_.1} parent=35 // pred_check_branch
        %286 = sbr.rel (%p284) target = $region44
      $region43: #{_lambda_.1} parent=35 // pred_region
        %s287 = smul.u32 2, %s14
        %p288 = scmp.lt.s32.totalorder %s287, 11
        %s289 = scalar_select %p288, %s287, 11
        %s290 = smul.addr %s289, 4
        %s291 = scalar_lea.vmem %s1, %s290
        %s292 = smul.u32 2, %s14
      $region44: #{_lambda_.1} parent=35 // pred_fallthru
        _
      // Predicated region
      $region45: #{_lambda_.1} parent=35 // pred_check
        %p293 = pneg %p98
      $region46: #{_lambda_.1} parent=35 // pred_check_branch
        %295 = sbr.rel (%p293) target = $region48
      $region47: #{_lambda_.1} parent=35 // pred_region
        %s296 = sadd.s32 %s14, 1
        %p297 = scmp.lt.s32.totalorder %s296, 5
        %s298 = scalar_select %p297, %s296, 5
        %s299 = smul.u32 2, %s298
        %p300 = scmp.lt.s32.totalorder %s299, 11
        %s301 = scalar_select %p300, %s299, 11
        %s302 = smul.addr %s301, 4
        %s303 = scalar_lea.vmem %s2, %s302
        %s304 = sadd.s32 %s14, 1
        %p305 = scmp.lt.s32.totalorder %s304, 5
        %s306 = scalar_select %p305, %s304, 5
        %s307 = smul.u32 2, %s306
      $region48: #{_lambda_.1} parent=35 // pred_fallthru
        _
    $region36: #{_lambda_.1} parent=5 // pred_fallthru
      _
    %p308 = scmp.le.s32.totalorder 1, %s14
    %p309 = scmp.lt.s32.totalorder %s14, 7
    %p310 = pnand %p308, %p309
    %p311 = pneg %p310
    // Predicated region
    $region49: #{_lambda_.1} parent=5 // pred_check
      _
    $region50: #{_lambda_.1} parent=5 // pred_check_branch
      %313 = sbr.rel (%p310) target = $region52
    $region51: #{_lambda_.1} parent=5 // pred_region
      %s314 = ssub.s32 %s14, 1
      %s315 = ssub.s32 %s19, 1
      %p316 = scmp.gt.s32.totalorder %s315, 0
      %s317 = scalar_select %p316, %s315, 0
      %s318 = smul.u32 2, %s317
      %p319 = scmp.lt.s32.totalorder %s318, 11
      %s320 = scalar_select %p319, %s318, 11
      %s321 = smul.addr %s320, 4
      %s322 = scalar_lea.vmem %s0, %s321
      %p323 = pneg %p46
      %p324 = pneg %p43
      %s325 = smul.u32 2, %s19
      %p326 = scmp.lt.s32.totalorder %s325, 11
      %s327 = scalar_select %p326, %s325, 11
      %s328 = smul.addr %s327, 4
      %s329 = scalar_lea.vmem %s1, %s328
      %p330 = pneg %p72
      %p331 = pneg %p69
      %s332 = sadd.s32 %s19, 1
      %p333 = scmp.lt.s32.totalorder %s332, 5
      %s334 = scalar_select %p333, %s332, 5
      %s335 = smul.u32 2, %s334
      %p336 = scmp.lt.s32.totalorder %s335, 11
      %s337 = scalar_select %p336, %s335, 11
      %s338 = smul.addr %s337, 4
      %s339 = scalar_lea.vmem %s2, %s338
      %p340 = pneg %p104
      %p341 = pneg %p101
      %p342 = pneg %p125
      %p343 = pneg %p122
      %p344 = pneg %p146
      %p345 = pneg %p143
      %p346 = pneg %p167
      %p347 = pneg %p164
      %p348 = pneg %p188
      %p349 = pneg %p185
      %p350 = pneg %p209
      %p351 = pneg %p206
      %p352 = pneg %p235
      %p353 = pneg %p232
      %s354 = smul.u32 2, %s19
      %p355 = scmp.lt.s32.totalorder %s354, 11
      %s356 = scalar_select %p355, %s354, 11
      %s357 = smul.addr %s356, 8
      %s358 = scalar_lea.vmem %s8, %s357
      %s359 = ssub.s32 %s19, 1
      %p360 = scmp.gt.s32.totalorder %s359, 0
      %s361 = scalar_select %p360, %s359, 0
      %s362 = smul.u32 2, %s361
      %p363 = scmp.lt.s32.totalorder %s362, 11
      %s364 = scalar_select %p363, %s362, 11
      %s365 = smul.addr %s364, 4
      %s366 = scalar_lea.vmem %s0, %s365
      %s367 = ssub.s32 %s19, 1
      %p368 = scmp.gt.s32.totalorder %s367, 0
      %s369 = scalar_select %p368, %s367, 0
      %s370 = smul.u32 2, %s369
      %s371 = smul.u32 2, %s19
      %p372 = scmp.lt.s32.totalorder %s371, 11
      %s373 = scalar_select %p372, %s371, 11
      %s374 = smul.addr %s373, 4
      %s375 = scalar_lea.vmem %s1, %s374
      %s376 = smul.u32 2, %s19
      %s377 = sadd.s32 %s19, 1
      %p378 = scmp.lt.s32.totalorder %s377, 5
      %s379 = scalar_select %p378, %s377, 5
      %s380 = smul.u32 2, %s379
      %p381 = scmp.lt.s32.totalorder %s380, 11
      %s382 = scalar_select %p381, %s380, 11
      %s383 = smul.addr %s382, 4
      %s384 = scalar_lea.vmem %s2, %s383
      %s385 = sadd.s32 %s19, 1
      %p386 = scmp.lt.s32.totalorder %s385, 5
      %s387 = scalar_select %p386, %s385, 5
      %s388 = smul.u32 2, %s387
      %s389 = smul.u32 2, %s19
      %p390 = scmp.lt.s32.totalorder %s389, 11
      %s391 = scalar_select %p390, %s389, 11
      %s392 = smul.addr %s391, 8
      %s393 = scalar_lea.vmem %s8, %s392
      %s394 = smul.u32 2, %s19
      %p398 = scmp.lt.s32.totalorder %s19, 0
      %s399 = ssub.s32 0, %s19
      %s400 = scalar_select %p398, %s399, %s19
      %s401 = sdiv.u32.pop %s400, 3
      %s402 = srem.u32.pop %s400, 3
      %s403 = ssub.s32 0, %s402
      %s404 = scalar_select %p398, %s403, %s402
      %p405 = scmp.ne.s32.totalorder %s404, 0
      %p406 = scmp.lt.s32.totalorder %s404, 0
      %p407 = pnand %p406, %p405
      %p408 = pneg %p407
      %s409 = sadd.s32 %s404, 3
      %s410 = scalar_select %p408, %s409, %s404
      %s411 = smul.u32 %s410, 16
      %s412 = ssub.s32 %s411, 16
      %v413 = vld [vmem:[%s366] sm:$0xf]
      %v414 = vld [vmem:[%s366 + $0x4] sm:$0xf]
      %v415 = vld [vmem:[%s375] sm:$0xf]
      %v416 = vld [vmem:[%s375 + $0x4] sm:$0xf]
      %v417 = vld [vmem:[%s384] sm:$0xf]
      %v418 = vld [vmem:[%s384 + $0x4] sm:$0xf]
      %v421 = vunpack.c.l.b16 %v413
      %v422 = vunpack.c.l.b16 %v414
      %v423 = vpack.c.b16 %v422, %v421
      %v427 = vunpack.c.l.b16 %v415
      %v428 = vunpack.c.l.b16 %v416
      %v429 = vpack.c.b16 %v428, %v427
      %v433 = vunpack.c.l.b16 %v417
      %v434 = vunpack.c.l.b16 %v418
      %v435 = vpack.c.b16 %v434, %v433
      %v437 = vlaneseq
      %v438 = vshrl.u32 %v437, 7
      %v439 = vadd.s32 %v438, 8
      %v440 = vadd.s32 %v438, 16
      %v441 = vadd.s32 %v438, 24
      %v442 = vadd.s32 %v438, 32
      %v443 = vadd.s32 %v438, 40
      %v444 = vstv %s412
      %v445 = vadd.s32 %v438, %v444
      %v446 = vadd.s32 %v439, %v444
      %v447 = vadd.s32 %v440, %v444
      %v448 = vadd.s32 %v441, %v444
      %v449 = vadd.s32 %v442, %v444
      %v450 = vadd.s32 %v443, %v444
      %vm451 = vcmp.ge.s32.totalorder %v445, 0
      %vm452 = vcmp.ge.s32.totalorder %v446, 0
      %vm453 = vcmp.ge.s32.totalorder %v447, 0
      %vm454 = vcmp.ge.s32.totalorder %v448, 0
      %vm455 = vcmp.ge.s32.totalorder %v449, 0
      %vm456 = vcmp.ge.s32.totalorder %v450, 0
      %vm457 = vcmp.lt.s32.totalorder %v445, 40
      %vm458 = vcmp.lt.s32.totalorder %v446, 40
      %vm459 = vcmp.lt.s32.totalorder %v447, 40
      %vm460 = vcmp.lt.s32.totalorder %v448, 40
      %vm461 = vcmp.lt.s32.totalorder %v449, 40
      %vm462 = vcmp.lt.s32.totalorder %v450, 40
      %vm463 = vmand %vm451, %vm457
      %vm464 = vmand %vm452, %vm458
      %vm465 = vmand %vm453, %vm459
      %vm466 = vmand %vm454, %vm460
      %vm467 = vmand %vm455, %vm461
      %vm468 = vmand %vm456, %vm462
      %v469 = vsel %vm463, 1, 0
      %v470 = vsel %vm464, 1, 0
      %v471 = vsel %vm465, 1, 0
      %v472 = vsel %vm466, 1, 0
      %v473 = vsel %vm467, 1, 0
      %v474 = vsel %vm468, 1, 0
      %vm475 = vcmp.eq.s32.totalorder %v469, 1
      %vm476 = vcmp.eq.s32.totalorder %v470, 1
      %vm477 = vcmp.eq.s32.totalorder %v471, 1
      %vm478 = vcmp.eq.s32.totalorder %v472, 1
      %vm479 = vcmp.eq.s32.totalorder %v473, 1
      %vm480 = vcmp.eq.s32.totalorder %v474, 1
      %vm481 = vmpackc.low %vm475, %vm475
      %vm482 = vmpackc.low %vm476, %vm476
      %vm483 = vmpackc.low %vm477, %vm477
      %vm484 = vmpackc.low %vm478, %vm478
      %vm485 = vmpackc.low %vm479, %vm479
      %vm486 = vmpackc.low %vm480, %vm480
      %v487 = vsel %vm481, 65537, 0
      %v488 = vsel %vm482, 65537, 0
      %v489 = vsel %vm483, 65537, 0
      %v490 = vsel %vm484, 65537, 0
      %v491 = vsel %vm485, 65537, 0
      %v492 = vsel %vm486, 65537, 0
      %v493 = vunpack.c.l.b16 %v487
      %v494 = vunpack.c.l.b16 %v488
      %v495 = vunpack.c.l.b16 %v489
      %v496 = vunpack.c.l.b16 %v490
      %v497 = vunpack.c.l.b16 %v491
      %v498 = vunpack.c.l.b16 %v492
      %v499 = vpack.c.b16 %v494, %v493
      %v500 = vpack.c.b16 %v496, %v495
      %v501 = vpack.c.b16 %v498, %v497
      %vm502 = vcmp.ne.s16.totalorder %v499, 0
      %vm503 = vcmp.ne.s16.totalorder %v500, 0
      %vm504 = vcmp.ne.s16.totalorder %v501, 0
      %v505 = vsel %vm502, %v423, 0
      %v506 = vsel %vm503, %v429, 0
      %v507 = vsel %vm504, %v435, 0
      %v508 = vld [vmem:[%s7] sm:$0x1]
      %v509 = vld [vmem:[%s3] sm:$0xf]
      %v510 = vld [vmem:[%s3 + $0x4] sm:$0xf]
      %v511 = vld [vmem:[%s3 + $0x8] sm:$0xf]
      %v512 = vld [vmem:[%s3 + $0xc] sm:$0xf]
      %v513 = vld [vmem:[%s3 + $0x10] sm:$0xf]
      %v514 = vld [vmem:[%s3 + $0x14] sm:$0xf]
      %v515 = vld [vmem:[%s3 + $0x18] sm:$0xf]
      %v516 = vld [vmem:[%s3 + $0x1c] sm:$0xf]
      %v517 = vld [vmem:[%s3 + $0x20] sm:$0xf]
      %v518 = vld [vmem:[%s3 + $0x24] sm:$0xf]
      %v519 = vld [vmem:[%s3 + $0x28] sm:$0xf]
      %v520 = vld [vmem:[%s3 + $0x2c] sm:$0xf]
      %v521 = vld [vmem:[%s3 + $0x30] sm:$0xf]
      %v522 = vld [vmem:[%s3 + $0x34] sm:$0xf]
      %v523 = vld [vmem:[%s3 + $0x38] sm:$0xf]
      %v524 = vld [vmem:[%s3 + $0x3c] sm:$0xf]
      %s525 = scalar_lea.vmem %s3, 64
      %v526 = vld [vmem:[%s525] sm:$0xf]
      %v527 = vld [vmem:[%s525 + $0x4] sm:$0xf]
      %v528 = vld [vmem:[%s525 + $0x8] sm:$0xf]
      %v529 = vld [vmem:[%s525 + $0xc] sm:$0xf]
      %v530 = vld [vmem:[%s525 + $0x10] sm:$0xf]
      %v531 = vld [vmem:[%s525 + $0x14] sm:$0xf]
      %v532 = vld [vmem:[%s525 + $0x18] sm:$0xf]
      %v533 = vld [vmem:[%s525 + $0x1c] sm:$0xf]
      %v534 = vld [vmem:[%s525 + $0x20] sm:$0xf]
      %v535 = vld [vmem:[%s525 + $0x24] sm:$0xf]
      %v536 = vld [vmem:[%s525 + $0x28] sm:$0xf]
      %v537 = vld [vmem:[%s525 + $0x2c] sm:$0xf]
      %v538 = vld [vmem:[%s525 + $0x30] sm:$0xf]
      %v539 = vld [vmem:[%s525 + $0x34] sm:$0xf]
      %v540 = vld [vmem:[%s525 + $0x38] sm:$0xf]
      %v541 = vld [vmem:[%s525 + $0x3c] sm:$0xf]
      %vm542 = vsmask.f32 2304
      %v544 = vshrl.u32 %v505, 16
      %v546 = vrot.slane %v544, 5
      %v547 = vshll.u32 %v505, 16
      %v549 = vrot.slane %v547, 6
      %v550 = vor.u32 %v546, %v549
      %v552 = vshrl.u32 %v506, 16
      %v554 = vrot.slane %v552, 5
      %v555 = vshll.u32 %v506, 16
      %v557 = vrot.slane %v555, 6
      %v558 = vor.u32 %v554, %v557
      %v559 = vsel %vm542, %v550, %v558
      %v561 = vshll.u32 %v507, 16
      %v563 = vrot.slane %v561, 6
      %v564 = vsel %vm542, %v558, %v563
      %v583 = vunpack.c.l.b16 %v526
      %v584 = vunpack.c.l.b16 %v527
      %v585 = vunpack.c.l.b16 %v528
      %v586 = vunpack.c.l.b16 %v529
      %v587 = vunpack.c.l.b16 %v530
      %v588 = vunpack.c.l.b16 %v531
      %v589 = vunpack.c.l.b16 %v532
      %v590 = vunpack.c.l.b16 %v533
      %v591 = vunpack.c.l.b16 %v534
      %v592 = vunpack.c.l.b16 %v535
      %v593 = vunpack.c.l.b16 %v536
      %v594 = vunpack.c.l.b16 %v537
      %v595 = vunpack.c.l.b16 %v538
      %v596 = vunpack.c.l.b16 %v539
      %v597 = vunpack.c.l.b16 %v540
      %v598 = vunpack.c.l.b16 %v541
      %v599 = vpack.c.b16 %v584, %v583
      %v600 = vpack.c.b16 %v586, %v585
      %v601 = vpack.c.b16 %v588, %v587
      %v602 = vpack.c.b16 %v590, %v589
      %v603 = vpack.c.b16 %v592, %v591
      %v604 = vpack.c.b16 %v594, %v593
      %v605 = vpack.c.b16 %v596, %v595
      %v606 = vpack.c.b16 %v598, %v597
      %615 = vmatprep.subr.bf16.mxu0 0
      %616 = vmatpush1.bf16.msra.mxu0 %v606
      %617 = vmatprep.subr.bf16.mxu0 0
      %618 = vmatpush1.bf16.msra.mxu0 %v605
      %619 = vmatprep.subr.bf16.mxu0 0
      %620 = vmatpush1.bf16.msra.mxu0 %v604
      %621 = vmatprep.subr.bf16.mxu0 0
      %622 = vmatpush1.bf16.msra.mxu0 %v603
      %623 = vmatprep.subr.bf16.mxu0 0
      %624 = vmatpush1.bf16.msra.mxu0 %v602
      %625 = vmatprep.subr.bf16.mxu0 0
      %626 = vmatpush1.bf16.msra.mxu0 %v601
      %627 = vmatprep.subr.bf16.mxu0 0
      %628 = vmatpush1.bf16.msra.mxu0 %v600
      %629 = vmatprep.subr.bf16.mxu0 0
      %630 = vmatpush1.bf16.msra.mxu0 %v599
      %631 = vmatprep.subr.bf16.mxu0 0
      %632 = vmatpush2.bf16.msra.mxu0 0
      %633 = vmatprep.subr.bf16.mxu0 0
      %634 = vmatpush2.bf16.msra.mxu0 0
      %635 = vmatprep.subr.bf16.mxu0 0
      %636 = vmatpush2.bf16.msra.mxu0 0
      %637 = vmatprep.subr.bf16.mxu0 0
      %638 = vmatpush2.bf16.msra.mxu0 0
      %639 = vmatprep.subr.bf16.mxu0 0
      %640 = vmatpush2.bf16.msra.mxu0 0
      %641 = vmatprep.subr.bf16.mxu0 0
      %642 = vmatpush2.bf16.msra.mxu0 0
      %643 = vmatprep.subr.bf16.mxu0 0
      %644 = vmatpush2.bf16.msra.mxu0 0
      %645 = vmatprep.subr.bf16.mxu0 0
      %646 = vmatpush2.bf16.msra.mxu0 0
      %647 = vmatprep.mubr.bf16.mxu0 0
      %648 = vmatmul.mubr.bf16.gmra.mxu0 %v559
      %v649 = vpop.f32.mrf.mxu0
      %v650 = vadd.f32 0.0, %v649
      %v651 = vpop.f32.mrf.mxu0
      %v652 = vpop.f32.mrf.mxu0
      %v653 = vadd.f32 0.0, %v652
      %v654 = vpop.f32.mrf.mxu0
      %655 = vmatprep.mubr.bf16.mxu0 0
      %656 = vmatmul.mubr.bf16.gmra.mxu0 %v564
      %v657 = vpop.f32.mrf.mxu0
      %v658 = vadd.f32 0.0, %v657
      %v659 = vpop.f32.mrf.mxu0
      %v660 = vpop.f32.mrf.mxu0
      %v661 = vpop.f32.mrf.mxu0
      %662 = vdwg.mxu0
      %vm665 = vcmask 1042432
      %v666 = vrot.slane %v505, 5
      %v667 = vrot.slane %v506, 5
      %v668 = vsel %vm665, %v666, %v667
      %v687 = vunpack.c.l.b16 %v509
      %v688 = vunpack.c.l.b16 %v510
      %v689 = vunpack.c.l.b16 %v511
      %v690 = vunpack.c.l.b16 %v512
      %v691 = vunpack.c.l.b16 %v513
      %v692 = vunpack.c.l.b16 %v514
      %v693 = vunpack.c.l.b16 %v515
      %v694 = vunpack.c.l.b16 %v516
      %v695 = vunpack.c.l.b16 %v517
      %v696 = vunpack.c.l.b16 %v518
      %v697 = vunpack.c.l.b16 %v519
      %v698 = vunpack.c.l.b16 %v520
      %v699 = vunpack.c.l.b16 %v521
      %v700 = vunpack.c.l.b16 %v522
      %v701 = vunpack.c.l.b16 %v523
      %v702 = vunpack.c.l.b16 %v524
      %v703 = vpack.c.b16 %v688, %v687
      %v704 = vpack.c.b16 %v690, %v689
      %v705 = vpack.c.b16 %v692, %v691
      %v706 = vpack.c.b16 %v694, %v693
      %v707 = vpack.c.b16 %v696, %v695
      %v708 = vpack.c.b16 %v698, %v697
      %v709 = vpack.c.b16 %v700, %v699
      %v710 = vpack.c.b16 %v702, %v701
      %719 = vmatprep.subr.bf16.mxu0 0
      %720 = vmatpush1.bf16.msra.mxu0 %v710
      %721 = vmatprep.subr.bf16.mxu0 0
      %722 = vmatpush1.bf16.msra.mxu0 %v709
      %723 = vmatprep.subr.bf16.mxu0 0
      %724 = vmatpush1.bf16.msra.mxu0 %v708
      %725 = vmatprep.subr.bf16.mxu0 0
      %726 = vmatpush1.bf16.msra.mxu0 %v707
      %727 = vmatprep.subr.bf16.mxu0 0
      %728 = vmatpush1.bf16.msra.mxu0 %v706
      %729 = vmatprep.subr.bf16.mxu0 0
      %730 = vmatpush1.bf16.msra.mxu0 %v705
      %731 = vmatprep.subr.bf16.mxu0 0
      %732 = vmatpush1.bf16.msra.mxu0 %v704
      %733 = vmatprep.subr.bf16.mxu0 0
      %734 = vmatpush1.bf16.msra.mxu0 %v703
      %735 = vmatprep.subr.bf16.mxu0 0
      %736 = vmatpush2.bf16.msra.mxu0 0
      %737 = vmatprep.subr.bf16.mxu0 0
      %738 = vmatpush2.bf16.msra.mxu0 0
      %739 = vmatprep.subr.bf16.mxu0 0
      %740 = vmatpush2.bf16.msra.mxu0 0
      %741 = vmatprep.subr.bf16.mxu0 0
      %742 = vmatpush2.bf16.msra.mxu0 0
      %743 = vmatprep.subr.bf16.mxu0 0
      %744 = vmatpush2.bf16.msra.mxu0 0
      %745 = vmatprep.subr.bf16.mxu0 0
      %746 = vmatpush2.bf16.msra.mxu0 0
      %747 = vmatprep.subr.bf16.mxu0 0
      %748 = vmatpush2.bf16.msra.mxu0 0
      %749 = vmatprep.subr.bf16.mxu0 0
      %750 = vmatpush2.bf16.msra.mxu0 0
      %751 = vmatprep.mubr.bf16.mxu0 0
      %752 = vmatmul.mubr.bf16.gmra.mxu0 %v668
      %v753 = vpop.f32.mrf.mxu0
      %v754 = vadd.f32 %v650, %v753
      %v755 = vpop.f32.mrf.mxu0
      %v756 = vpop.f32.mrf.mxu0
      %v757 = vadd.f32 %v653, %v756
      %v758 = vpop.f32.mrf.mxu0
      %759 = vmatprep.mubr.bf16.mxu0 0
      %760 = vmatmul.mubr.bf16.gmra.mxu0 %v667
      %v761 = vpop.f32.mrf.mxu0
      %v762 = vadd.f32 %v658, %v761
      %v763 = vpop.f32.mrf.mxu0
      %v764 = vpop.f32.mrf.mxu0
      %v765 = vpop.f32.mrf.mxu0
      %766 = vdwg.mxu0
      %s767 = scalar_lea.vmem %s3, 128
      %v768 = vld [vmem:[%s767] sm:$0xf]
      %v769 = vld [vmem:[%s767 + $0x4] sm:$0xf]
      %v770 = vld [vmem:[%s767 + $0x8] sm:$0xf]
      %v771 = vld [vmem:[%s767 + $0xc] sm:$0xf]
      %v772 = vld [vmem:[%s767 + $0x10] sm:$0xf]
      %v773 = vld [vmem:[%s767 + $0x14] sm:$0xf]
      %v774 = vld [vmem:[%s767 + $0x18] sm:$0xf]
      %v775 = vld [vmem:[%s767 + $0x1c] sm:$0xf]
      %v776 = vld [vmem:[%s767 + $0x20] sm:$0xf]
      %v777 = vld [vmem:[%s767 + $0x24] sm:$0xf]
      %v778 = vld [vmem:[%s767 + $0x28] sm:$0xf]
      %v779 = vld [vmem:[%s767 + $0x2c] sm:$0xf]
      %v780 = vld [vmem:[%s767 + $0x30] sm:$0xf]
      %v781 = vld [vmem:[%s767 + $0x34] sm:$0xf]
      %v782 = vld [vmem:[%s767 + $0x38] sm:$0xf]
      %v783 = vld [vmem:[%s767 + $0x3c] sm:$0xf]
      %vm785 = vcmask 1041408
      %v786 = vrot.slane %v505, 6
      %v787 = vrot.slane %v506, 6
      %v788 = vsel %vm785, %v786, %v787
      %v789 = vrot.slane %v507, 6
      %v790 = vsel %vm785, %v787, %v789
      %v809 = vunpack.c.l.b16 %v768
      %v810 = vunpack.c.l.b16 %v769
      %v811 = vunpack.c.l.b16 %v770
      %v812 = vunpack.c.l.b16 %v771
      %v813 = vunpack.c.l.b16 %v772
      %v814 = vunpack.c.l.b16 %v773
      %v815 = vunpack.c.l.b16 %v774
      %v816 = vunpack.c.l.b16 %v775
      %v817 = vunpack.c.l.b16 %v776
      %v818 = vunpack.c.l.b16 %v777
      %v819 = vunpack.c.l.b16 %v778
      %v820 = vunpack.c.l.b16 %v779
      %v821 = vunpack.c.l.b16 %v780
      %v822 = vunpack.c.l.b16 %v781
      %v823 = vunpack.c.l.b16 %v782
      %v824 = vunpack.c.l.b16 %v783
      %v825 = vpack.c.b16 %v810, %v809
      %v826 = vpack.c.b16 %v812, %v811
      %v827 = vpack.c.b16 %v814, %v813
      %v828 = vpack.c.b16 %v816, %v815
      %v829 = vpack.c.b16 %v818, %v817
      %v830 = vpack.c.b16 %v820, %v819
      %v831 = vpack.c.b16 %v822, %v821
      %v832 = vpack.c.b16 %v824, %v823
      %841 = vmatprep.subr.bf16.mxu0 0
      %842 = vmatpush1.bf16.msra.mxu0 %v832
      %843 = vmatprep.subr.bf16.mxu0 0
      %844 = vmatpush1.bf16.msra.mxu0 %v831
      %845 = vmatprep.subr.bf16.mxu0 0
      %846 = vmatpush1.bf16.msra.mxu0 %v830
      %847 = vmatprep.subr.bf16.mxu0 0
      %848 = vmatpush1.bf16.msra.mxu0 %v829
      %849 = vmatprep.subr.bf16.mxu0 0
      %850 = vmatpush1.bf16.msra.mxu0 %v828
      %851 = vmatprep.subr.bf16.mxu0 0
      %852 = vmatpush1.bf16.msra.mxu0 %v827
      %853 = vmatprep.subr.bf16.mxu0 0
      %854 = vmatpush1.bf16.msra.mxu0 %v826
      %855 = vmatprep.subr.bf16.mxu0 0
      %856 = vmatpush1.bf16.msra.mxu0 %v825
      %857 = vmatprep.subr.bf16.mxu0 0
      %858 = vmatpush2.bf16.msra.mxu0 0
      %859 = vmatprep.subr.bf16.mxu0 0
      %860 = vmatpush2.bf16.msra.mxu0 0
      %861 = vmatprep.subr.bf16.mxu0 0
      %862 = vmatpush2.bf16.msra.mxu0 0
      %863 = vmatprep.subr.bf16.mxu0 0
      %864 = vmatpush2.bf16.msra.mxu0 0
      %865 = vmatprep.subr.bf16.mxu0 0
      %866 = vmatpush2.bf16.msra.mxu0 0
      %867 = vmatprep.subr.bf16.mxu0 0
      %868 = vmatpush2.bf16.msra.mxu0 0
      %869 = vmatprep.subr.bf16.mxu0 0
      %870 = vmatpush2.bf16.msra.mxu0 0
      %871 = vmatprep.subr.bf16.mxu0 0
      %872 = vmatpush2.bf16.msra.mxu0 0
      %873 = vmatprep.mubr.bf16.mxu0 0
      %874 = vmatmul.mubr.bf16.gmra.mxu0 %v788
      %v875 = vpop.f32.mrf.mxu0
      %v876 = vadd.f32 0.0, %v875
      %v877 = vpop.f32.mrf.mxu0
      %v878 = vpop.f32.mrf.mxu0
      %v879 = vadd.f32 0.0, %v878
      %v880 = vpop.f32.mrf.mxu0
      %881 = vmatprep.mubr.bf16.mxu0 0
      %882 = vmatmul.mubr.bf16.gmra.mxu0 %v790
      %v883 = vpop.f32.mrf.mxu0
      %v884 = vadd.f32 0.0, %v883
      %v885 = vpop.f32.mrf.mxu0
      %v886 = vpop.f32.mrf.mxu0
      %v887 = vpop.f32.mrf.mxu0
      %888 = vdwg.mxu0
      %v889 = vadd.f32 %v754, %v876
      %v890 = vadd.f32 %v757, %v879
      %v891 = vadd.f32 %v762, %v884
      %s892 = scalar_lea.vmem %s3, 192
      %v893 = vld [vmem:[%s892] sm:$0xf]
      %v894 = vld [vmem:[%s892 + $0x4] sm:$0xf]
      %v895 = vld [vmem:[%s892 + $0x8] sm:$0xf]
      %v896 = vld [vmem:[%s892 + $0xc] sm:$0xf]
      %v897 = vld [vmem:[%s892 + $0x10] sm:$0xf]
      %v898 = vld [vmem:[%s892 + $0x14] sm:$0xf]
      %v899 = vld [vmem:[%s892 + $0x18] sm:$0xf]
      %v900 = vld [vmem:[%s892 + $0x1c] sm:$0xf]
      %v901 = vld [vmem:[%s892 + $0x20] sm:$0xf]
      %v902 = vld [vmem:[%s892 + $0x24] sm:$0xf]
      %v903 = vld [vmem:[%s892 + $0x28] sm:$0xf]
      %v904 = vld [vmem:[%s892 + $0x2c] sm:$0xf]
      %v905 = vld [vmem:[%s892 + $0x30] sm:$0xf]
      %v906 = vld [vmem:[%s892 + $0x34] sm:$0xf]
      %v907 = vld [vmem:[%s892 + $0x38] sm:$0xf]
      %v908 = vld [vmem:[%s892 + $0x3c] sm:$0xf]
      %vm909 = vsmask.f32 1280
      %v910 = vrot.slane %v544, 6
      %v911 = vrot.slane %v547, 7
      %v912 = vor.u32 %v910, %v911
      %v913 = vrot.slane %v552, 6
      %v914 = vrot.slane %v555, 7
      %v915 = vor.u32 %v913, %v914
      %v916 = vsel %vm909, %v912, %v915
      %v917 = vshrl.u32 %v507, 16
      %v919 = vrot.slane %v917, 6
      %v920 = vrot.slane %v561, 7
      %v921 = vor.u32 %v919, %v920
      %v922 = vsel %vm909, %v915, %v921
      %v941 = vunpack.c.l.b16 %v893
      %v942 = vunpack.c.l.b16 %v894
      %v943 = vunpack.c.l.b16 %v895
      %v944 = vunpack.c.l.b16 %v896
      %v945 = vunpack.c.l.b16 %v897
      %v946 = vunpack.c.l.b16 %v898
      %v947 = vunpack.c.l.b16 %v899
      %v948 = vunpack.c.l.b16 %v900
      %v949 = vunpack.c.l.b16 %v901
      %v950 = vunpack.c.l.b16 %v902
      %v951 = vunpack.c.l.b16 %v903
      %v952 = vunpack.c.l.b16 %v904
      %v953 = vunpack.c.l.b16 %v905
      %v954 = vunpack.c.l.b16 %v906
      %v955 = vunpack.c.l.b16 %v907
      %v956 = vunpack.c.l.b16 %v908
      %v957 = vpack.c.b16 %v942, %v941
      %v958 = vpack.c.b16 %v944, %v943
      %v959 = vpack.c.b16 %v946, %v945
      %v960 = vpack.c.b16 %v948, %v947
      %v961 = vpack.c.b16 %v950, %v949
      %v962 = vpack.c.b16 %v952, %v951
      %v963 = vpack.c.b16 %v954, %v953
      %v964 = vpack.c.b16 %v956, %v955
      %973 = vmatprep.subr.bf16.mxu0 0
      %974 = vmatpush1.bf16.msra.mxu0 %v964
      %975 = vmatprep.subr.bf16.mxu0 0
      %976 = vmatpush1.bf16.msra.mxu0 %v963
      %977 = vmatprep.subr.bf16.mxu0 0
      %978 = vmatpush1.bf16.msra.mxu0 %v962
      %979 = vmatprep.subr.bf16.mxu0 0
      %980 = vmatpush1.bf16.msra.mxu0 %v961
      %981 = vmatprep.subr.bf16.mxu0 0
      %982 = vmatpush1.bf16.msra.mxu0 %v960
      %983 = vmatprep.subr.bf16.mxu0 0
      %984 = vmatpush1.bf16.msra.mxu0 %v959
      %985 = vmatprep.subr.bf16.mxu0 0
      %986 = vmatpush1.bf16.msra.mxu0 %v958
      %987 = vmatprep.subr.bf16.mxu0 0
      %988 = vmatpush1.bf16.msra.mxu0 %v957
      %989 = vmatprep.subr.bf16.mxu0 0
      %990 = vmatpush2.bf16.msra.mxu0 0
      %991 = vmatprep.subr.bf16.mxu0 0
      %992 = vmatpush2.bf16.msra.mxu0 0
      %993 = vmatprep.subr.bf16.mxu0 0
      %994 = vmatpush2.bf16.msra.mxu0 0
      %995 = vmatprep.subr.bf16.mxu0 0
      %996 = vmatpush2.bf16.msra.mxu0 0
      %997 = vmatprep.subr.bf16.mxu0 0
      %998 = vmatpush2.bf16.msra.mxu0 0
      %999 = vmatprep.subr.bf16.mxu0 0
      %1000 = vmatpush2.bf16.msra.mxu0 0
      %1001 = vmatprep.subr.bf16.mxu0 0
      %1002 = vmatpush2.bf16.msra.mxu0 0
      %1003 = vmatprep.subr.bf16.mxu0 0
      %1004 = vmatpush2.bf16.msra.mxu0 0
      %1005 = vmatprep.mubr.bf16.mxu0 0
      %1006 = vmatmul.mubr.bf16.gmra.mxu0 %v916
      %v1007 = vpop.f32.mrf.mxu0
      %v1008 = vadd.f32 0.0, %v1007
      %v1009 = vpop.f32.mrf.mxu0
      %v1010 = vpop.f32.mrf.mxu0
      %v1011 = vadd.f32 0.0, %v1010
      %v1012 = vpop.f32.mrf.mxu0
      %1013 = vmatprep.mubr.bf16.mxu0 0
      %1014 = vmatmul.mubr.bf16.gmra.mxu0 %v922
      %v1015 = vpop.f32.mrf.mxu0
      %v1016 = vadd.f32 0.0, %v1015
      %v1017 = vpop.f32.mrf.mxu0
      %v1018 = vpop.f32.mrf.mxu0
      %v1019 = vpop.f32.mrf.mxu0
      %1020 = vdwg.mxu0
      %v1021 = vadd.f32 %v889, %v1008
      %v1022 = vadd.f32 %v890, %v1011
      %v1023 = vadd.f32 %v891, %v1016
      %s1024 = scalar_lea.vmem %s3, 256
      %v1025 = vld [vmem:[%s1024] sm:$0xf]
      %v1026 = vld [vmem:[%s1024 + $0x4] sm:$0xf]
      %v1027 = vld [vmem:[%s1024 + $0x8] sm:$0xf]
      %v1028 = vld [vmem:[%s1024 + $0xc] sm:$0xf]
      %v1029 = vld [vmem:[%s1024 + $0x10] sm:$0xf]
      %v1030 = vld [vmem:[%s1024 + $0x14] sm:$0xf]
      %v1031 = vld [vmem:[%s1024 + $0x18] sm:$0xf]
      %v1032 = vld [vmem:[%s1024 + $0x1c] sm:$0xf]
      %v1033 = vld [vmem:[%s1024 + $0x20] sm:$0xf]
      %v1034 = vld [vmem:[%s1024 + $0x24] sm:$0xf]
      %v1035 = vld [vmem:[%s1024 + $0x28] sm:$0xf]
      %v1036 = vld [vmem:[%s1024 + $0x2c] sm:$0xf]
      %v1037 = vld [vmem:[%s1024 + $0x30] sm:$0xf]
      %v1038 = vld [vmem:[%s1024 + $0x34] sm:$0xf]
      %v1039 = vld [vmem:[%s1024 + $0x38] sm:$0xf]
      %v1040 = vld [vmem:[%s1024 + $0x3c] sm:$0xf]
      %vm1041 = vcmask 1040384
      %v1042 = vrot.slane %v505, 7
      %v1043 = vrot.slane %v506, 7
      %v1044 = vsel %vm1041, %v1042, %v1043
      %v1045 = vrot.slane %v507, 7
      %v1046 = vsel %vm1041, %v1043, %v1045
      %v1065 = vunpack.c.l.b16 %v1025
      %v1066 = vunpack.c.l.b16 %v1026
      %v1067 = vunpack.c.l.b16 %v1027
      %v1068 = vunpack.c.l.b16 %v1028
      %v1069 = vunpack.c.l.b16 %v1029
      %v1070 = vunpack.c.l.b16 %v1030
      %v1071 = vunpack.c.l.b16 %v1031
      %v1072 = vunpack.c.l.b16 %v1032
      %v1073 = vunpack.c.l.b16 %v1033
      %v1074 = vunpack.c.l.b16 %v1034
      %v1075 = vunpack.c.l.b16 %v1035
      %v1076 = vunpack.c.l.b16 %v1036
      %v1077 = vunpack.c.l.b16 %v1037
      %v1078 = vunpack.c.l.b16 %v1038
      %v1079 = vunpack.c.l.b16 %v1039
      %v1080 = vunpack.c.l.b16 %v1040
      %v1081 = vpack.c.b16 %v1066, %v1065
      %v1082 = vpack.c.b16 %v1068, %v1067
      %v1083 = vpack.c.b16 %v1070, %v1069
      %v1084 = vpack.c.b16 %v1072, %v1071
      %v1085 = vpack.c.b16 %v1074, %v1073
      %v1086 = vpack.c.b16 %v1076, %v1075
      %v1087 = vpack.c.b16 %v1078, %v1077
      %v1088 = vpack.c.b16 %v1080, %v1079
      %1097 = vmatprep.subr.bf16.mxu0 0
      %1098 = vmatpush1.bf16.msra.mxu0 %v1088
      %1099 = vmatprep.subr.bf16.mxu0 0
      %1100 = vmatpush1.bf16.msra.mxu0 %v1087
      %1101 = vmatprep.subr.bf16.mxu0 0
      %1102 = vmatpush1.bf16.msra.mxu0 %v1086
      %1103 = vmatprep.subr.bf16.mxu0 0
      %1104 = vmatpush1.bf16.msra.mxu0 %v1085
      %1105 = vmatprep.subr.bf16.mxu0 0
      %1106 = vmatpush1.bf16.msra.mxu0 %v1084
      %1107 = vmatprep.subr.bf16.mxu0 0
      %1108 = vmatpush1.bf16.msra.mxu0 %v1083
      %1109 = vmatprep.subr.bf16.mxu0 0
      %1110 = vmatpush1.bf16.msra.mxu0 %v1082
      %1111 = vmatprep.subr.bf16.mxu0 0
      %1112 = vmatpush1.bf16.msra.mxu0 %v1081
      %1113 = vmatprep.subr.bf16.mxu0 0
      %1114 = vmatpush2.bf16.msra.mxu0 0
      %1115 = vmatprep.subr.bf16.mxu0 0
      %1116 = vmatpush2.bf16.msra.mxu0 0
      %1117 = vmatprep.subr.bf16.mxu0 0
      %1118 = vmatpush2.bf16.msra.mxu0 0
      %1119 = vmatprep.subr.bf16.mxu0 0
      %1120 = vmatpush2.bf16.msra.mxu0 0
      %1121 = vmatprep.subr.bf16.mxu0 0
      %1122 = vmatpush2.bf16.msra.mxu0 0
      %1123 = vmatprep.subr.bf16.mxu0 0
      %1124 = vmatpush2.bf16.msra.mxu0 0
      %1125 = vmatprep.subr.bf16.mxu0 0
      %1126 = vmatpush2.bf16.msra.mxu0 0
      %1127 = vmatprep.subr.bf16.mxu0 0
      %1128 = vmatpush2.bf16.msra.mxu0 0
      %1129 = vmatprep.mubr.bf16.mxu0 0
      %1130 = vmatmul.mubr.bf16.gmra.mxu0 %v1044
      %v1131 = vpop.f32.mrf.mxu0
      %v1132 = vadd.f32 0.0, %v1131
      %v1133 = vpop.f32.mrf.mxu0
      %v1134 = vpop.f32.mrf.mxu0
      %v1135 = vadd.f32 0.0, %v1134
      %v1136 = vpop.f32.mrf.mxu0
      %1137 = vmatprep.mubr.bf16.mxu0 0
      %1138 = vmatmul.mubr.bf16.gmra.mxu0 %v1046
      %v1139 = vpop.f32.mrf.mxu0
      %v1140 = vadd.f32 0.0, %v1139
      %v1141 = vpop.f32.mrf.mxu0
      %v1142 = vpop.f32.mrf.mxu0
      %v1143 = vpop.f32.mrf.mxu0
      %1144 = vdwg.mxu0
      %v1145 = vadd.f32 %v1021, %v1132
      %v1146 = vadd.f32 %v1022, %v1135
      %v1147 = vadd.f32 %v1023, %v1140
      %s1148 = scalar_lea.vmem %s3, 320
      %v1149 = vld [vmem:[%s1148] sm:$0xf]
      %v1150 = vld [vmem:[%s1148 + $0x4] sm:$0xf]
      %v1151 = vld [vmem:[%s1148 + $0x8] sm:$0xf]
      %v1152 = vld [vmem:[%s1148 + $0xc] sm:$0xf]
      %v1153 = vld [vmem:[%s1148 + $0x10] sm:$0xf]
      %v1154 = vld [vmem:[%s1148 + $0x14] sm:$0xf]
      %v1155 = vld [vmem:[%s1148 + $0x18] sm:$0xf]
      %v1156 = vld [vmem:[%s1148 + $0x1c] sm:$0xf]
      %v1157 = vld [vmem:[%s1148 + $0x20] sm:$0xf]
      %v1158 = vld [vmem:[%s1148 + $0x24] sm:$0xf]
      %v1159 = vld [vmem:[%s1148 + $0x28] sm:$0xf]
      %v1160 = vld [vmem:[%s1148 + $0x2c] sm:$0xf]
      %v1161 = vld [vmem:[%s1148 + $0x30] sm:$0xf]
      %v1162 = vld [vmem:[%s1148 + $0x34] sm:$0xf]
      %v1163 = vld [vmem:[%s1148 + $0x38] sm:$0xf]
      %v1164 = vld [vmem:[%s1148 + $0x3c] sm:$0xf]
      %vm1165 = vsmask.f32 256
      %v1166 = vrot.slane %v544, 7
      %v1167 = vrot.slane %v552, 7
      %v1168 = vor.u32 %v1167, %v555
      %v1169 = vsel %vm1165, %v1166, %v1168
      %v1170 = vrot.slane %v917, 7
      %v1171 = vor.u32 %v1170, %v561
      %v1172 = vsel %vm1165, %v1167, %v1171
      %v1191 = vunpack.c.l.b16 %v1149
      %v1192 = vunpack.c.l.b16 %v1150
      %v1193 = vunpack.c.l.b16 %v1151
      %v1194 = vunpack.c.l.b16 %v1152
      %v1195 = vunpack.c.l.b16 %v1153
      %v1196 = vunpack.c.l.b16 %v1154
      %v1197 = vunpack.c.l.b16 %v1155
      %v1198 = vunpack.c.l.b16 %v1156
      %v1199 = vunpack.c.l.b16 %v1157
      %v1200 = vunpack.c.l.b16 %v1158
      %v1201 = vunpack.c.l.b16 %v1159
      %v1202 = vunpack.c.l.b16 %v1160
      %v1203 = vunpack.c.l.b16 %v1161
      %v1204 = vunpack.c.l.b16 %v1162
      %v1205 = vunpack.c.l.b16 %v1163
      %v1206 = vunpack.c.l.b16 %v1164
      %v1207 = vpack.c.b16 %v1192, %v1191
      %v1208 = vpack.c.b16 %v1194, %v1193
      %v1209 = vpack.c.b16 %v1196, %v1195
      %v1210 = vpack.c.b16 %v1198, %v1197
      %v1211 = vpack.c.b16 %v1200, %v1199
      %v1212 = vpack.c.b16 %v1202, %v1201
      %v1213 = vpack.c.b16 %v1204, %v1203
      %v1214 = vpack.c.b16 %v1206, %v1205
      %1223 = vmatprep.subr.bf16.mxu0 0
      %1224 = vmatpush1.bf16.msra.mxu0 %v1214
      %1225 = vmatprep.subr.bf16.mxu0 0
      %1226 = vmatpush1.bf16.msra.mxu0 %v1213
      %1227 = vmatprep.subr.bf16.mxu0 0
      %1228 = vmatpush1.bf16.msra.mxu0 %v1212
      %1229 = vmatprep.subr.bf16.mxu0 0
      %1230 = vmatpush1.bf16.msra.mxu0 %v1211
      %1231 = vmatprep.subr.bf16.mxu0 0
      %1232 = vmatpush1.bf16.msra.mxu0 %v1210
      %1233 = vmatprep.subr.bf16.mxu0 0
      %1234 = vmatpush1.bf16.msra.mxu0 %v1209
      %1235 = vmatprep.subr.bf16.mxu0 0
      %1236 = vmatpush1.bf16.msra.mxu0 %v1208
      %1237 = vmatprep.subr.bf16.mxu0 0
      %1238 = vmatpush1.bf16.msra.mxu0 %v1207
      %1239 = vmatprep.subr.bf16.mxu0 0
      %1240 = vmatpush2.bf16.msra.mxu0 0
      %1241 = vmatprep.subr.bf16.mxu0 0
      %1242 = vmatpush2.bf16.msra.mxu0 0
      %1243 = vmatprep.subr.bf16.mxu0 0
      %1244 = vmatpush2.bf16.msra.mxu0 0
      %1245 = vmatprep.subr.bf16.mxu0 0
      %1246 = vmatpush2.bf16.msra.mxu0 0
      %1247 = vmatprep.subr.bf16.mxu0 0
      %1248 = vmatpush2.bf16.msra.mxu0 0
      %1249 = vmatprep.subr.bf16.mxu0 0
      %1250 = vmatpush2.bf16.msra.mxu0 0
      %1251 = vmatprep.subr.bf16.mxu0 0
      %1252 = vmatpush2.bf16.msra.mxu0 0
      %1253 = vmatprep.subr.bf16.mxu0 0
      %1254 = vmatpush2.bf16.msra.mxu0 0
      %1255 = vmatprep.mubr.bf16.mxu0 0
      %1256 = vmatmul.mubr.bf16.gmra.mxu0 %v1169
      %v1257 = vpop.f32.mrf.mxu0
      %v1258 = vadd.f32 0.0, %v1257
      %v1259 = vpop.f32.mrf.mxu0
      %v1260 = vpop.f32.mrf.mxu0
      %v1261 = vadd.f32 0.0, %v1260
      %v1262 = vpop.f32.mrf.mxu0
      %1263 = vmatprep.mubr.bf16.mxu0 0
      %1264 = vmatmul.mubr.bf16.gmra.mxu0 %v1172
      %v1265 = vpop.f32.mrf.mxu0
      %v1266 = vadd.f32 0.0, %v1265
      %v1267 = vpop.f32.mrf.mxu0
      %v1268 = vpop.f32.mrf.mxu0
      %v1269 = vpop.f32.mrf.mxu0
      %1270 = vdwg.mxu0
      %v1271 = vadd.f32 %v1145, %v1258
      %v1272 = vadd.f32 %v1146, %v1261
      %v1273 = vadd.f32 %v1147, %v1266
      %s1274 = scalar_lea.vmem %s3, 384
      %v1275 = vld [vmem:[%s1274] sm:$0xf]
      %v1276 = vld [vmem:[%s1274 + $0x4] sm:$0xf]
      %v1277 = vld [vmem:[%s1274 + $0x8] sm:$0xf]
      %v1278 = vld [vmem:[%s1274 + $0xc] sm:$0xf]
      %v1279 = vld [vmem:[%s1274 + $0x10] sm:$0xf]
      %v1280 = vld [vmem:[%s1274 + $0x14] sm:$0xf]
      %v1281 = vld [vmem:[%s1274 + $0x18] sm:$0xf]
      %v1282 = vld [vmem:[%s1274 + $0x1c] sm:$0xf]
      %v1283 = vld [vmem:[%s1274 + $0x20] sm:$0xf]
      %v1284 = vld [vmem:[%s1274 + $0x24] sm:$0xf]
      %v1285 = vld [vmem:[%s1274 + $0x28] sm:$0xf]
      %v1286 = vld [vmem:[%s1274 + $0x2c] sm:$0xf]
      %v1287 = vld [vmem:[%s1274 + $0x30] sm:$0xf]
      %v1288 = vld [vmem:[%s1274 + $0x34] sm:$0xf]
      %v1289 = vld [vmem:[%s1274 + $0x38] sm:$0xf]
      %v1290 = vld [vmem:[%s1274 + $0x3c] sm:$0xf]
      %v1307 = vunpack.c.l.b16 %v1275
      %v1308 = vunpack.c.l.b16 %v1276
      %v1309 = vunpack.c.l.b16 %v1277
      %v1310 = vunpack.c.l.b16 %v1278
      %v1311 = vunpack.c.l.b16 %v1279
      %v1312 = vunpack.c.l.b16 %v1280
      %v1313 = vunpack.c.l.b16 %v1281
      %v1314 = vunpack.c.l.b16 %v1282
      %v1315 = vunpack.c.l.b16 %v1283
      %v1316 = vunpack.c.l.b16 %v1284
      %v1317 = vunpack.c.l.b16 %v1285
      %v1318 = vunpack.c.l.b16 %v1286
      %v1319 = vunpack.c.l.b16 %v1287
      %v1320 = vunpack.c.l.b16 %v1288
      %v1321 = vunpack.c.l.b16 %v1289
      %v1322 = vunpack.c.l.b16 %v1290
      %v1323 = vpack.c.b16 %v1308, %v1307
      %v1324 = vpack.c.b16 %v1310, %v1309
      %v1325 = vpack.c.b16 %v1312, %v1311
      %v1326 = vpack.c.b16 %v1314, %v1313
      %v1327 = vpack.c.b16 %v1316, %v1315
      %v1328 = vpack.c.b16 %v1318, %v1317
      %v1329 = vpack.c.b16 %v1320, %v1319
      %v1330 = vpack.c.b16 %v1322, %v1321
      %1339 = vmatprep.subr.bf16.mxu0 0
      %1340 = vmatpush1.bf16.msra.mxu0 %v1330
      %1341 = vmatprep.subr.bf16.mxu0 0
      %1342 = vmatpush1.bf16.msra.mxu0 %v1329
      %1343 = vmatprep.subr.bf16.mxu0 0
      %1344 = vmatpush1.bf16.msra.mxu0 %v1328
      %1345 = vmatprep.subr.bf16.mxu0 0
      %1346 = vmatpush1.bf16.msra.mxu0 %v1327
      %1347 = vmatprep.subr.bf16.mxu0 0
      %1348 = vmatpush1.bf16.msra.mxu0 %v1326
      %1349 = vmatprep.subr.bf16.mxu0 0
      %1350 = vmatpush1.bf16.msra.mxu0 %v1325
      %1351 = vmatprep.subr.bf16.mxu0 0
      %1352 = vmatpush1.bf16.msra.mxu0 %v1324
      %1353 = vmatprep.subr.bf16.mxu0 0
      %1354 = vmatpush1.bf16.msra.mxu0 %v1323
      %1355 = vmatprep.subr.bf16.mxu0 0
      %1356 = vmatpush2.bf16.msra.mxu0 0
      %1357 = vmatprep.subr.bf16.mxu0 0
      %1358 = vmatpush2.bf16.msra.mxu0 0
      %1359 = vmatprep.subr.bf16.mxu0 0
      %1360 = vmatpush2.bf16.msra.mxu0 0
      %1361 = vmatprep.subr.bf16.mxu0 0
      %1362 = vmatpush2.bf16.msra.mxu0 0
      %1363 = vmatprep.subr.bf16.mxu0 0
      %1364 = vmatpush2.bf16.msra.mxu0 0
      %1365 = vmatprep.subr.bf16.mxu0 0
      %1366 = vmatpush2.bf16.msra.mxu0 0
      %1367 = vmatprep.subr.bf16.mxu0 0
      %1368 = vmatpush2.bf16.msra.mxu0 0
      %1369 = vmatprep.subr.bf16.mxu0 0
      %1370 = vmatpush2.bf16.msra.mxu0 0
      %1371 = vmatprep.mubr.bf16.mxu0 0
      %1372 = vmatmul.mubr.bf16.gmra.mxu0 %v506
      %v1373 = vpop.f32.mrf.mxu0
      %v1374 = vadd.f32 0.0, %v1373
      %v1375 = vpop.f32.mrf.mxu0
      %v1376 = vpop.f32.mrf.mxu0
      %v1377 = vadd.f32 0.0, %v1376
      %v1378 = vpop.f32.mrf.mxu0
      %1379 = vmatprep.mubr.bf16.mxu0 0
      %1380 = vmatmul.mubr.bf16.gmra.mxu0 %v507
      %v1381 = vpop.f32.mrf.mxu0
      %v1382 = vadd.f32 0.0, %v1381
      %v1383 = vpop.f32.mrf.mxu0
      %v1384 = vpop.f32.mrf.mxu0
      %v1385 = vpop.f32.mrf.mxu0
      %1386 = vdwg.mxu0
      %v1387 = vadd.f32 %v1271, %v1374
      %v1388 = vadd.f32 %v1272, %v1377
      %v1389 = vadd.f32 %v1273, %v1382
      %v1390 = vlaneseq
      %v1391 = vshrl.u32 %v1390, 7
      %v1392 = vsub.s32 0, %v1391
      %v1393 = vrot.slane %v508, %v1392
      %v1394 = vadd.f32 %v1387, %v1393
      %v1395 = vadd.f32 %v1388, %v1393
      %v1396 = vadd.f32 %v1389, %v1393
      %v1397 = vmax.f32 %v1394, 0.0
      %v1398 = vmax.f32 %v1395, 0.0
      %v1399 = vmax.f32 %v1396, 0.0
      %s1400 = sadd.s32 %s411, 4294967293
      %v1401 = vstv %s1400
      %v1402 = vadd.s32 %v438, %v1401
      %v1403 = vadd.s32 %v439, %v1401
      %v1404 = vadd.s32 %v440, %v1401
      %vm1405 = vcmp.ge.s32.totalorder %v1402, 0
      %vm1406 = vcmp.ge.s32.totalorder %v1403, 0
      %vm1407 = vcmp.ge.s32.totalorder %v1404, 0
      %vm1408 = vcmp.lt.s32.totalorder %v1402, 40
      %vm1409 = vcmp.lt.s32.totalorder %v1403, 40
      %vm1410 = vcmp.lt.s32.totalorder %v1404, 40
      %vm1411 = vmand %vm1405, %vm1408
      %vm1412 = vmand %vm1406, %vm1409
      %vm1413 = vmand %vm1407, %vm1410
      %v1414 = vsel %vm1411, 1, 0
      %v1415 = vsel %vm1412, 1, 0
      %v1416 = vsel %vm1413, 1, 0
      %vm1417 = vcmp.eq.s32.totalorder %v1414, 1
      %vm1418 = vcmp.eq.s32.totalorder %v1415, 1
      %vm1419 = vcmp.eq.s32.totalorder %v1416, 1
      %v1420 = vsel %vm1417, %v1397, 0.0
      %v1421 = vsel %vm1418, %v1398, 0.0
      %v1422 = vsel %vm1419, %v1399, 0.0
      %v1423 = vpack.c.bf16 %v1421, %v1420
      %v1424 = vpack.c.bf16 %v1422, %v1422
      %v1425 = vld [vmem:[%s7 + $0x1] sm:$0x1]
      %v1426 = vld [vmem:[%s4] sm:$0xf]
      %v1427 = vld [vmem:[%s4 + $0x4] sm:$0xf]
      %v1428 = vld [vmem:[%s4 + $0x8] sm:$0xf]
      %v1429 = vld [vmem:[%s4 + $0xc] sm:$0xf]
      %v1430 = vld [vmem:[%s4 + $0x10] sm:$0xf]
      %v1431 = vld [vmem:[%s4 + $0x14] sm:$0xf]
      %v1432 = vld [vmem:[%s4 + $0x18] sm:$0xf]
      %v1433 = vld [vmem:[%s4 + $0x1c] sm:$0xf]
      %v1434 = vld [vmem:[%s4 + $0x20] sm:$0xf]
      %v1435 = vld [vmem:[%s4 + $0x24] sm:$0xf]
      %v1436 = vld [vmem:[%s4 + $0x28] sm:$0xf]
      %v1437 = vld [vmem:[%s4 + $0x2c] sm:$0xf]
      %v1438 = vld [vmem:[%s4 + $0x30] sm:$0xf]
      %v1439 = vld [vmem:[%s4 + $0x34] sm:$0xf]
      %v1440 = vld [vmem:[%s4 + $0x38] sm:$0xf]
      %v1441 = vld [vmem:[%s4 + $0x3c] sm:$0xf]
      %s1442 = scalar_lea.vmem %s4, 64
      %v1443 = vld [vmem:[%s1442] sm:$0xf]
      %v1444 = vld [vmem:[%s1442 + $0x4] sm:$0xf]
      %v1445 = vld [vmem:[%s1442 + $0x8] sm:$0xf]
      %v1446 = vld [vmem:[%s1442 + $0xc] sm:$0xf]
      %v1447 = vld [vmem:[%s1442 + $0x10] sm:$0xf]
      %v1448 = vld [vmem:[%s1442 + $0x14] sm:$0xf]
      %v1449 = vld [vmem:[%s1442 + $0x18] sm:$0xf]
      %v1450 = vld [vmem:[%s1442 + $0x1c] sm:$0xf]
      %v1451 = vld [vmem:[%s1442 + $0x20] sm:$0xf]
      %v1452 = vld [vmem:[%s1442 + $0x24] sm:$0xf]
      %v1453 = vld [vmem:[%s1442 + $0x28] sm:$0xf]
      %v1454 = vld [vmem:[%s1442 + $0x2c] sm:$0xf]
      %v1455 = vld [vmem:[%s1442 + $0x30] sm:$0xf]
      %v1456 = vld [vmem:[%s1442 + $0x34] sm:$0xf]
      %v1457 = vld [vmem:[%s1442 + $0x38] sm:$0xf]
      %v1458 = vld [vmem:[%s1442 + $0x3c] sm:$0xf]
      %vm1459 = vsmask.f32 7424
      %v1461 = vshrl.u32 %v1423, 16
      %v1463 = vshll.u32 %v1423, 16
      %v1465 = vrot.slane %v1463, 1
      %v1466 = vor.u32 %v1461, %v1465
      %v1468 = vshll.u32 %v1424, 16
      %v1470 = vrot.slane %v1468, 1
      %v1471 = vsel %vm1459, %v1466, %v1470
      %v1472 = vshrl.u32 %v1424, 16
      %v1474 = vor.u32 %v1472, %v1470
      %v1493 = vunpack.c.l.b16 %v1443
      %v1494 = vunpack.c.l.b16 %v1444
      %v1495 = vunpack.c.l.b16 %v1445
      %v1496 = vunpack.c.l.b16 %v1446
      %v1497 = vunpack.c.l.b16 %v1447
      %v1498 = vunpack.c.l.b16 %v1448
      %v1499 = vunpack.c.l.b16 %v1449
      %v1500 = vunpack.c.l.b16 %v1450
      %v1501 = vunpack.c.l.b16 %v1451
      %v1502 = vunpack.c.l.b16 %v1452
      %v1503 = vunpack.c.l.b16 %v1453
      %v1504 = vunpack.c.l.b16 %v1454
      %v1505 = vunpack.c.l.b16 %v1455
      %v1506 = vunpack.c.l.b16 %v1456
      %v1507 = vunpack.c.l.b16 %v1457
      %v1508 = vunpack.c.l.b16 %v1458
      %v1509 = vpack.c.b16 %v1494, %v1493
      %v1510 = vpack.c.b16 %v1496, %v1495
      %v1511 = vpack.c.b16 %v1498, %v1497
      %v1512 = vpack.c.b16 %v1500, %v1499
      %v1513 = vpack.c.b16 %v1502, %v1501
      %v1514 = vpack.c.b16 %v1504, %v1503
      %v1515 = vpack.c.b16 %v1506, %v1505
      %v1516 = vpack.c.b16 %v1508, %v1507
      %1525 = vmatprep.subr.bf16.mxu0 0
      %1526 = vmatpush1.bf16.msra.mxu0 %v1516
      %1527 = vmatprep.subr.bf16.mxu0 0
      %1528 = vmatpush1.bf16.msra.mxu0 %v1515
      %1529 = vmatprep.subr.bf16.mxu0 0
      %1530 = vmatpush1.bf16.msra.mxu0 %v1514
      %1531 = vmatprep.subr.bf16.mxu0 0
      %1532 = vmatpush1.bf16.msra.mxu0 %v1513
      %1533 = vmatprep.subr.bf16.mxu0 0
      %1534 = vmatpush1.bf16.msra.mxu0 %v1512
      %1535 = vmatprep.subr.bf16.mxu0 0
      %1536 = vmatpush1.bf16.msra.mxu0 %v1511
      %1537 = vmatprep.subr.bf16.mxu0 0
      %1538 = vmatpush1.bf16.msra.mxu0 %v1510
      %1539 = vmatprep.subr.bf16.mxu0 0
      %1540 = vmatpush1.bf16.msra.mxu0 %v1509
      %1541 = vmatprep.subr.bf16.mxu0 0
      %1542 = vmatpush2.bf16.msra.mxu0 0
      %1543 = vmatprep.subr.bf16.mxu0 0
      %1544 = vmatpush2.bf16.msra.mxu0 0
      %1545 = vmatprep.subr.bf16.mxu0 0
      %1546 = vmatpush2.bf16.msra.mxu0 0
      %1547 = vmatprep.subr.bf16.mxu0 0
      %1548 = vmatpush2.bf16.msra.mxu0 0
      %1549 = vmatprep.subr.bf16.mxu0 0
      %1550 = vmatpush2.bf16.msra.mxu0 0
      %1551 = vmatprep.subr.bf16.mxu0 0
      %1552 = vmatpush2.bf16.msra.mxu0 0
      %1553 = vmatprep.subr.bf16.mxu0 0
      %1554 = vmatpush2.bf16.msra.mxu0 0
      %1555 = vmatprep.subr.bf16.mxu0 0
      %1556 = vmatpush2.bf16.msra.mxu0 0
      %1557 = vmatprep.mubr.bf16.mxu0 0
      %1558 = vmatmul.mubr.bf16.gmra.mxu0 %v1471
      %v1559 = vpop.f32.mrf.mxu0
      %v1560 = vadd.f32 0.0, %v1559
      %v1561 = vpop.f32.mrf.mxu0
      %v1562 = vpop.f32.mrf.mxu0
      %v1563 = vadd.f32 0.0, %v1562
      %v1564 = vpop.f32.mrf.mxu0
      %1565 = vmatprep.mubr.bf16.mxu0 0
      %1566 = vmatmul.mubr.bf16.gmra.mxu0 %v1474
      %v1567 = vpop.f32.mrf.mxu0
      %v1568 = vadd.f32 0.0, %v1567
      %v1569 = vpop.f32.mrf.mxu0
      %v1570 = vpop.f32.mrf.mxu0
      %v1571 = vpop.f32.mrf.mxu0
      %1572 = vdwg.mxu0
      %v1589 = vunpack.c.l.b16 %v1426
      %v1590 = vunpack.c.l.b16 %v1427
      %v1591 = vunpack.c.l.b16 %v1428
      %v1592 = vunpack.c.l.b16 %v1429
      %v1593 = vunpack.c.l.b16 %v1430
      %v1594 = vunpack.c.l.b16 %v1431
      %v1595 = vunpack.c.l.b16 %v1432
      %v1596 = vunpack.c.l.b16 %v1433
      %v1597 = vunpack.c.l.b16 %v1434
      %v1598 = vunpack.c.l.b16 %v1435
      %v1599 = vunpack.c.l.b16 %v1436
      %v1600 = vunpack.c.l.b16 %v1437
      %v1601 = vunpack.c.l.b16 %v1438
      %v1602 = vunpack.c.l.b16 %v1439
      %v1603 = vunpack.c.l.b16 %v1440
      %v1604 = vunpack.c.l.b16 %v1441
      %v1605 = vpack.c.b16 %v1590, %v1589
      %v1606 = vpack.c.b16 %v1592, %v1591
      %v1607 = vpack.c.b16 %v1594, %v1593
      %v1608 = vpack.c.b16 %v1596, %v1595
      %v1609 = vpack.c.b16 %v1598, %v1597
      %v1610 = vpack.c.b16 %v1600, %v1599
      %v1611 = vpack.c.b16 %v1602, %v1601
      %v1612 = vpack.c.b16 %v1604, %v1603
      %1621 = vmatprep.subr.bf16.mxu0 0
      %1622 = vmatpush1.bf16.msra.mxu0 %v1612
      %1623 = vmatprep.subr.bf16.mxu0 0
      %1624 = vmatpush1.bf16.msra.mxu0 %v1611
      %1625 = vmatprep.subr.bf16.mxu0 0
      %1626 = vmatpush1.bf16.msra.mxu0 %v1610
      %1627 = vmatprep.subr.bf16.mxu0 0
      %1628 = vmatpush1.bf16.msra.mxu0 %v1609
      %1629 = vmatprep.subr.bf16.mxu0 0
      %1630 = vmatpush1.bf16.msra.mxu0 %v1608
      %1631 = vmatprep.subr.bf16.mxu0 0
      %1632 = vmatpush1.bf16.msra.mxu0 %v1607
      %1633 = vmatprep.subr.bf16.mxu0 0
      %1634 = vmatpush1.bf16.msra.mxu0 %v1606
      %1635 = vmatprep.subr.bf16.mxu0 0
      %1636 = vmatpush1.bf16.msra.mxu0 %v1605
      %1637 = vmatprep.subr.bf16.mxu0 0
      %1638 = vmatpush2.bf16.msra.mxu0 0
      %1639 = vmatprep.subr.bf16.mxu0 0
      %1640 = vmatpush2.bf16.msra.mxu0 0
      %1641 = vmatprep.subr.bf16.mxu0 0
      %1642 = vmatpush2.bf16.msra.mxu0 0
      %1643 = vmatprep.subr.bf16.mxu0 0
      %1644 = vmatpush2.bf16.msra.mxu0 0
      %1645 = vmatprep.subr.bf16.mxu0 0
      %1646 = vmatpush2.bf16.msra.mxu0 0
      %1647 = vmatprep.subr.bf16.mxu0 0
      %1648 = vmatpush2.bf16.msra.mxu0 0
      %1649 = vmatprep.subr.bf16.mxu0 0
      %1650 = vmatpush2.bf16.msra.mxu0 0
      %1651 = vmatprep.subr.bf16.mxu0 0
      %1652 = vmatpush2.bf16.msra.mxu0 0
      %1653 = vmatprep.mubr.bf16.mxu0 0
      %1654 = vmatmul.mubr.bf16.gmra.mxu0 %v1423
      %v1655 = vpop.f32.mrf.mxu0
      %v1656 = vadd.f32 %v1560, %v1655
      %v1657 = vpop.f32.mrf.mxu0
      %v1658 = vpop.f32.mrf.mxu0
      %v1659 = vadd.f32 %v1563, %v1658
      %v1660 = vpop.f32.mrf.mxu0
      %1661 = vmatprep.mubr.bf16.mxu0 0
      %1662 = vmatmul.mubr.bf16.gmra.mxu0 %v1424
      %v1663 = vpop.f32.mrf.mxu0
      %v1664 = vadd.f32 %v1568, %v1663
      %v1665 = vpop.f32.mrf.mxu0
      %v1666 = vpop.f32.mrf.mxu0
      %v1667 = vpop.f32.mrf.mxu0
      %1668 = vdwg.mxu0
      %s1669 = scalar_lea.vmem %s4, 128
      %v1670 = vld [vmem:[%s1669] sm:$0xf]
      %v1671 = vld [vmem:[%s1669 + $0x4] sm:$0xf]
      %v1672 = vld [vmem:[%s1669 + $0x8] sm:$0xf]
      %v1673 = vld [vmem:[%s1669 + $0xc] sm:$0xf]
      %v1674 = vld [vmem:[%s1669 + $0x10] sm:$0xf]
      %v1675 = vld [vmem:[%s1669 + $0x14] sm:$0xf]
      %v1676 = vld [vmem:[%s1669 + $0x18] sm:$0xf]
      %v1677 = vld [vmem:[%s1669 + $0x1c] sm:$0xf]
      %v1678 = vld [vmem:[%s1669 + $0x20] sm:$0xf]
      %v1679 = vld [vmem:[%s1669 + $0x24] sm:$0xf]
      %v1680 = vld [vmem:[%s1669 + $0x28] sm:$0xf]
      %v1681 = vld [vmem:[%s1669 + $0x2c] sm:$0xf]
      %v1682 = vld [vmem:[%s1669 + $0x30] sm:$0xf]
      %v1683 = vld [vmem:[%s1669 + $0x34] sm:$0xf]
      %v1684 = vld [vmem:[%s1669 + $0x38] sm:$0xf]
      %v1685 = vld [vmem:[%s1669 + $0x3c] sm:$0xf]
      %vm1688 = vcmask 1046528
      %v1689 = vrot.slane %v1423, 1
      %v1690 = vrot.slane %v1424, 1
      %v1691 = vsel %vm1688, %v1689, %v1690
      %v1710 = vunpack.c.l.b16 %v1670
      %v1711 = vunpack.c.l.b16 %v1671
      %v1712 = vunpack.c.l.b16 %v1672
      %v1713 = vunpack.c.l.b16 %v1673
      %v1714 = vunpack.c.l.b16 %v1674
      %v1715 = vunpack.c.l.b16 %v1675
      %v1716 = vunpack.c.l.b16 %v1676
      %v1717 = vunpack.c.l.b16 %v1677
      %v1718 = vunpack.c.l.b16 %v1678
      %v1719 = vunpack.c.l.b16 %v1679
      %v1720 = vunpack.c.l.b16 %v1680
      %v1721 = vunpack.c.l.b16 %v1681
      %v1722 = vunpack.c.l.b16 %v1682
      %v1723 = vunpack.c.l.b16 %v1683
      %v1724 = vunpack.c.l.b16 %v1684
      %v1725 = vunpack.c.l.b16 %v1685
      %v1726 = vpack.c.b16 %v1711, %v1710
      %v1727 = vpack.c.b16 %v1713, %v1712
      %v1728 = vpack.c.b16 %v1715, %v1714
      %v1729 = vpack.c.b16 %v1717, %v1716
      %v1730 = vpack.c.b16 %v1719, %v1718
      %v1731 = vpack.c.b16 %v1721, %v1720
      %v1732 = vpack.c.b16 %v1723, %v1722
      %v1733 = vpack.c.b16 %v1725, %v1724
      %1742 = vmatprep.subr.bf16.mxu0 0
      %1743 = vmatpush1.bf16.msra.mxu0 %v1733
      %1744 = vmatprep.subr.bf16.mxu0 0
      %1745 = vmatpush1.bf16.msra.mxu0 %v1732
      %1746 = vmatprep.subr.bf16.mxu0 0
      %1747 = vmatpush1.bf16.msra.mxu0 %v1731
      %1748 = vmatprep.subr.bf16.mxu0 0
      %1749 = vmatpush1.bf16.msra.mxu0 %v1730
      %1750 = vmatprep.subr.bf16.mxu0 0
      %1751 = vmatpush1.bf16.msra.mxu0 %v1729
      %1752 = vmatprep.subr.bf16.mxu0 0
      %1753 = vmatpush1.bf16.msra.mxu0 %v1728
      %1754 = vmatprep.subr.bf16.mxu0 0
      %1755 = vmatpush1.bf16.msra.mxu0 %v1727
      %1756 = vmatprep.subr.bf16.mxu0 0
      %1757 = vmatpush1.bf16.msra.mxu0 %v1726
      %1758 = vmatprep.subr.bf16.mxu0 0
      %1759 = vmatpush2.bf16.msra.mxu0 0
      %1760 = vmatprep.subr.bf16.mxu0 0
      %1761 = vmatpush2.bf16.msra.mxu0 0
      %1762 = vmatprep.subr.bf16.mxu0 0
      %1763 = vmatpush2.bf16.msra.mxu0 0
      %1764 = vmatprep.subr.bf16.mxu0 0
      %1765 = vmatpush2.bf16.msra.mxu0 0
      %1766 = vmatprep.subr.bf16.mxu0 0
      %1767 = vmatpush2.bf16.msra.mxu0 0
      %1768 = vmatprep.subr.bf16.mxu0 0
      %1769 = vmatpush2.bf16.msra.mxu0 0
      %1770 = vmatprep.subr.bf16.mxu0 0
      %1771 = vmatpush2.bf16.msra.mxu0 0
      %1772 = vmatprep.subr.bf16.mxu0 0
      %1773 = vmatpush2.bf16.msra.mxu0 0
      %1774 = vmatprep.mubr.bf16.mxu0 0
      %1775 = vmatmul.mubr.bf16.gmra.mxu0 %v1691
      %v1776 = vpop.f32.mrf.mxu0
      %v1777 = vadd.f32 0.0, %v1776
      %v1778 = vpop.f32.mrf.mxu0
      %v1779 = vpop.f32.mrf.mxu0
      %v1780 = vadd.f32 0.0, %v1779
      %v1781 = vpop.f32.mrf.mxu0
      %1782 = vmatprep.mubr.bf16.mxu0 0
      %1783 = vmatmul.mubr.bf16.gmra.mxu0 %v1690
      %v1784 = vpop.f32.mrf.mxu0
      %v1785 = vadd.f32 0.0, %v1784
      %v1786 = vpop.f32.mrf.mxu0
      %v1787 = vpop.f32.mrf.mxu0
      %v1788 = vpop.f32.mrf.mxu0
      %1789 = vdwg.mxu0
      %v1790 = vadd.f32 %v1656, %v1777
      %v1791 = vadd.f32 %v1659, %v1780
      %v1792 = vadd.f32 %v1664, %v1785
      %s1793 = scalar_lea.vmem %s4, 192
      %v1794 = vld [vmem:[%s1793] sm:$0xf]
      %v1795 = vld [vmem:[%s1793 + $0x4] sm:$0xf]
      %v1796 = vld [vmem:[%s1793 + $0x8] sm:$0xf]
      %v1797 = vld [vmem:[%s1793 + $0xc] sm:$0xf]
      %v1798 = vld [vmem:[%s1793 + $0x10] sm:$0xf]
      %v1799 = vld [vmem:[%s1793 + $0x14] sm:$0xf]
      %v1800 = vld [vmem:[%s1793 + $0x18] sm:$0xf]
      %v1801 = vld [vmem:[%s1793 + $0x1c] sm:$0xf]
      %v1802 = vld [vmem:[%s1793 + $0x20] sm:$0xf]
      %v1803 = vld [vmem:[%s1793 + $0x24] sm:$0xf]
      %v1804 = vld [vmem:[%s1793 + $0x28] sm:$0xf]
      %v1805 = vld [vmem:[%s1793 + $0x2c] sm:$0xf]
      %v1806 = vld [vmem:[%s1793 + $0x30] sm:$0xf]
      %v1807 = vld [vmem:[%s1793 + $0x34] sm:$0xf]
      %v1808 = vld [vmem:[%s1793 + $0x38] sm:$0xf]
      %v1809 = vld [vmem:[%s1793 + $0x3c] sm:$0xf]
      %vm1810 = vsmask.f32 6400
      %v1811 = vrot.slane %v1461, 1
      %v1812 = vrot.slane %v1463, 2
      %v1813 = vor.u32 %v1811, %v1812
      %v1814 = vrot.slane %v1472, 1
      %v1815 = vrot.slane %v1468, 2
      %v1816 = vor.u32 %v1814, %v1815
      %v1817 = vsel %vm1810, %v1813, %v1816
      %v1836 = vunpack.c.l.b16 %v1794
      %v1837 = vunpack.c.l.b16 %v1795
      %v1838 = vunpack.c.l.b16 %v1796
      %v1839 = vunpack.c.l.b16 %v1797
      %v1840 = vunpack.c.l.b16 %v1798
      %v1841 = vunpack.c.l.b16 %v1799
      %v1842 = vunpack.c.l.b16 %v1800
      %v1843 = vunpack.c.l.b16 %v1801
      %v1844 = vunpack.c.l.b16 %v1802
      %v1845 = vunpack.c.l.b16 %v1803
      %v1846 = vunpack.c.l.b16 %v1804
      %v1847 = vunpack.c.l.b16 %v1805
      %v1848 = vunpack.c.l.b16 %v1806
      %v1849 = vunpack.c.l.b16 %v1807
      %v1850 = vunpack.c.l.b16 %v1808
      %v1851 = vunpack.c.l.b16 %v1809
      %v1852 = vpack.c.b16 %v1837, %v1836
      %v1853 = vpack.c.b16 %v1839, %v1838
      %v1854 = vpack.c.b16 %v1841, %v1840
      %v1855 = vpack.c.b16 %v1843, %v1842
      %v1856 = vpack.c.b16 %v1845, %v1844
      %v1857 = vpack.c.b16 %v1847, %v1846
      %v1858 = vpack.c.b16 %v1849, %v1848
      %v1859 = vpack.c.b16 %v1851, %v1850
      %1868 = vmatprep.subr.bf16.mxu0 0
      %1869 = vmatpush1.bf16.msra.mxu0 %v1859
      %1870 = vmatprep.subr.bf16.mxu0 0
      %1871 = vmatpush1.bf16.msra.mxu0 %v1858
      %1872 = vmatprep.subr.bf16.mxu0 0
      %1873 = vmatpush1.bf16.msra.mxu0 %v1857
      %1874 = vmatprep.subr.bf16.mxu0 0
      %1875 = vmatpush1.bf16.msra.mxu0 %v1856
      %1876 = vmatprep.subr.bf16.mxu0 0
      %1877 = vmatpush1.bf16.msra.mxu0 %v1855
      %1878 = vmatprep.subr.bf16.mxu0 0
      %1879 = vmatpush1.bf16.msra.mxu0 %v1854
      %1880 = vmatprep.subr.bf16.mxu0 0
      %1881 = vmatpush1.bf16.msra.mxu0 %v1853
      %1882 = vmatprep.subr.bf16.mxu0 0
      %1883 = vmatpush1.bf16.msra.mxu0 %v1852
      %1884 = vmatprep.subr.bf16.mxu0 0
      %1885 = vmatpush2.bf16.msra.mxu0 0
      %1886 = vmatprep.subr.bf16.mxu0 0
      %1887 = vmatpush2.bf16.msra.mxu0 0
      %1888 = vmatprep.subr.bf16.mxu0 0
      %1889 = vmatpush2.bf16.msra.mxu0 0
      %1890 = vmatprep.subr.bf16.mxu0 0
      %1891 = vmatpush2.bf16.msra.mxu0 0
      %1892 = vmatprep.subr.bf16.mxu0 0
      %1893 = vmatpush2.bf16.msra.mxu0 0
      %1894 = vmatprep.subr.bf16.mxu0 0
      %1895 = vmatpush2.bf16.msra.mxu0 0
      %1896 = vmatprep.subr.bf16.mxu0 0
      %1897 = vmatpush2.bf16.msra.mxu0 0
      %1898 = vmatprep.subr.bf16.mxu0 0
      %1899 = vmatpush2.bf16.msra.mxu0 0
      %1900 = vmatprep.mubr.bf16.mxu0 0
      %1901 = vmatmul.mubr.bf16.gmra.mxu0 %v1817
      %v1902 = vpop.f32.mrf.mxu0
      %v1903 = vadd.f32 0.0, %v1902
      %v1904 = vpop.f32.mrf.mxu0
      %v1905 = vpop.f32.mrf.mxu0
      %v1906 = vadd.f32 0.0, %v1905
      %v1907 = vpop.f32.mrf.mxu0
      %1908 = vmatprep.mubr.bf16.mxu0 0
      %1909 = vmatmul.mubr.bf16.gmra.mxu0 %v1816
      %v1910 = vpop.f32.mrf.mxu0
      %v1911 = vadd.f32 0.0, %v1910
      %v1912 = vpop.f32.mrf.mxu0
      %v1913 = vpop.f32.mrf.mxu0
      %v1914 = vpop.f32.mrf.mxu0
      %1915 = vdwg.mxu0
      %v1916 = vadd.f32 %v1790, %v1903
      %v1917 = vadd.f32 %v1791, %v1906
      %v1918 = vadd.f32 %v1792, %v1911
      %s1919 = scalar_lea.vmem %s4, 256
      %v1920 = vld [vmem:[%s1919] sm:$0xf]
      %v1921 = vld [vmem:[%s1919 + $0x4] sm:$0xf]
      %v1922 = vld [vmem:[%s1919 + $0x8] sm:$0xf]
      %v1923 = vld [vmem:[%s1919 + $0xc] sm:$0xf]
      %v1924 = vld [vmem:[%s1919 + $0x10] sm:$0xf]
      %v1925 = vld [vmem:[%s1919 + $0x14] sm:$0xf]
      %v1926 = vld [vmem:[%s1919 + $0x18] sm:$0xf]
      %v1927 = vld [vmem:[%s1919 + $0x1c] sm:$0xf]
      %v1928 = vld [vmem:[%s1919 + $0x20] sm:$0xf]
      %v1929 = vld [vmem:[%s1919 + $0x24] sm:$0xf]
      %v1930 = vld [vmem:[%s1919 + $0x28] sm:$0xf]
      %v1931 = vld [vmem:[%s1919 + $0x2c] sm:$0xf]
      %v1932 = vld [vmem:[%s1919 + $0x30] sm:$0xf]
      %v1933 = vld [vmem:[%s1919 + $0x34] sm:$0xf]
      %v1934 = vld [vmem:[%s1919 + $0x38] sm:$0xf]
      %v1935 = vld [vmem:[%s1919 + $0x3c] sm:$0xf]
      %vm1936 = vcmask 1045504
      %v1937 = vrot.slane %v1423, 2
      %v1938 = vrot.slane %v1424, 2
      %v1939 = vsel %vm1936, %v1937, %v1938
      %v1958 = vunpack.c.l.b16 %v1920
      %v1959 = vunpack.c.l.b16 %v1921
      %v1960 = vunpack.c.l.b16 %v1922
      %v1961 = vunpack.c.l.b16 %v1923
      %v1962 = vunpack.c.l.b16 %v1924
      %v1963 = vunpack.c.l.b16 %v1925
      %v1964 = vunpack.c.l.b16 %v1926
      %v1965 = vunpack.c.l.b16 %v1927
      %v1966 = vunpack.c.l.b16 %v1928
      %v1967 = vunpack.c.l.b16 %v1929
      %v1968 = vunpack.c.l.b16 %v1930
      %v1969 = vunpack.c.l.b16 %v1931
      %v1970 = vunpack.c.l.b16 %v1932
      %v1971 = vunpack.c.l.b16 %v1933
      %v1972 = vunpack.c.l.b16 %v1934
      %v1973 = vunpack.c.l.b16 %v1935
      %v1974 = vpack.c.b16 %v1959, %v1958
      %v1975 = vpack.c.b16 %v1961, %v1960
      %v1976 = vpack.c.b16 %v1963, %v1962
      %v1977 = vpack.c.b16 %v1965, %v1964
      %v1978 = vpack.c.b16 %v1967, %v1966
      %v1979 = vpack.c.b16 %v1969, %v1968
      %v1980 = vpack.c.b16 %v1971, %v1970
      %v1981 = vpack.c.b16 %v1973, %v1972
      %1990 = vmatprep.subr.bf16.mxu0 0
      %1991 = vmatpush1.bf16.msra.mxu0 %v1981
      %1992 = vmatprep.subr.bf16.mxu0 0
      %1993 = vmatpush1.bf16.msra.mxu0 %v1980
      %1994 = vmatprep.subr.bf16.mxu0 0
      %1995 = vmatpush1.bf16.msra.mxu0 %v1979
      %1996 = vmatprep.subr.bf16.mxu0 0
      %1997 = vmatpush1.bf16.msra.mxu0 %v1978
      %1998 = vmatprep.subr.bf16.mxu0 0
      %1999 = vmatpush1.bf16.msra.mxu0 %v1977
      %2000 = vmatprep.subr.bf16.mxu0 0
      %2001 = vmatpush1.bf16.msra.mxu0 %v1976
      %2002 = vmatprep.subr.bf16.mxu0 0
      %2003 = vmatpush1.bf16.msra.mxu0 %v1975
      %2004 = vmatprep.subr.bf16.mxu0 0
      %2005 = vmatpush1.bf16.msra.mxu0 %v1974
      %2006 = vmatprep.subr.bf16.mxu0 0
      %2007 = vmatpush2.bf16.msra.mxu0 0
      %2008 = vmatprep.subr.bf16.mxu0 0
      %2009 = vmatpush2.bf16.msra.mxu0 0
      %2010 = vmatprep.subr.bf16.mxu0 0
      %2011 = vmatpush2.bf16.msra.mxu0 0
      %2012 = vmatprep.subr.bf16.mxu0 0
      %2013 = vmatpush2.bf16.msra.mxu0 0
      %2014 = vmatprep.subr.bf16.mxu0 0
      %2015 = vmatpush2.bf16.msra.mxu0 0
      %2016 = vmatprep.subr.bf16.mxu0 0
      %2017 = vmatpush2.bf16.msra.mxu0 0
      %2018 = vmatprep.subr.bf16.mxu0 0
      %2019 = vmatpush2.bf16.msra.mxu0 0
      %2020 = vmatprep.subr.bf16.mxu0 0
      %2021 = vmatpush2.bf16.msra.mxu0 0
      %2022 = vmatprep.mubr.bf16.mxu0 0
      %2023 = vmatmul.mubr.bf16.gmra.mxu0 %v1939
      %v2024 = vpop.f32.mrf.mxu0
      %v2025 = vadd.f32 0.0, %v2024
      %v2026 = vpop.f32.mrf.mxu0
      %v2027 = vpop.f32.mrf.mxu0
      %v2028 = vadd.f32 0.0, %v2027
      %v2029 = vpop.f32.mrf.mxu0
      %2030 = vmatprep.mubr.bf16.mxu0 0
      %2031 = vmatmul.mubr.bf16.gmra.mxu0 %v1938
      %v2032 = vpop.f32.mrf.mxu0
      %v2033 = vadd.f32 0.0, %v2032
      %v2034 = vpop.f32.mrf.mxu0
      %v2035 = vpop.f32.mrf.mxu0
      %v2036 = vpop.f32.mrf.mxu0
      %2037 = vdwg.mxu0
      %v2038 = vadd.f32 %v1916, %v2025
      %v2039 = vadd.f32 %v1917, %v2028
      %v2040 = vadd.f32 %v1918, %v2033
      %v2041 = vlaneseq
      %v2042 = vshrl.u32 %v2041, 7
      %v2043 = vsub.s32 0, %v2042
      %v2044 = vrot.slane %v1425, %v2043
      %v2045 = vadd.f32 %v2038, %v2044
      %v2046 = vadd.f32 %v2039, %v2044
      %v2047 = vadd.f32 %v2040, %v2044
      %v2048 = vmax.f32 %v2045, 0.0
      %v2049 = vmax.f32 %v2046, 0.0
      %v2050 = vmax.f32 %v2047, 0.0
      %s2051 = sadd.s32 %s411, 4294967295
      %v2052 = vstv %s2051
      %v2053 = vadd.s32 %v438, %v2052
      %v2054 = vadd.s32 %v439, %v2052
      %v2055 = vadd.s32 %v440, %v2052
      %vm2056 = vcmp.ge.s32.totalorder %v2053, 0
      %vm2057 = vcmp.ge.s32.totalorder %v2054, 0
      %vm2058 = vcmp.ge.s32.totalorder %v2055, 0
      %vm2059 = vcmp.lt.s32.totalorder %v2053, 40
      %vm2060 = vcmp.lt.s32.totalorder %v2054, 40
      %vm2061 = vcmp.lt.s32.totalorder %v2055, 40
      %vm2062 = vmand %vm2056, %vm2059
      %vm2063 = vmand %vm2057, %vm2060
      %vm2064 = vmand %vm2058, %vm2061
      %v2065 = vsel %vm2062, 1, 0
      %v2066 = vsel %vm2063, 1, 0
      %v2067 = vsel %vm2064, 1, 0
      %vm2068 = vcmp.eq.s32.totalorder %v2065, 1
      %vm2069 = vcmp.eq.s32.totalorder %v2066, 1
      %vm2070 = vcmp.eq.s32.totalorder %v2067, 1
      %v2071 = vsel %vm2068, %v2048, 0.0
      %v2072 = vsel %vm2069, %v2049, 0.0
      %v2073 = vsel %vm2070, %v2050, 0.0
      %v2074 = vpack.c.bf16 %v2072, %v2071
      %v2075 = vpack.c.bf16 %v2073, %v2073
      %v2076 = vld [vmem:[%s7 + $0x2] sm:$0x1]
      %v2077 = vld [vmem:[%s5] sm:$0xf]
      %v2078 = vld [vmem:[%s5 + $0x4] sm:$0xf]
      %v2079 = vld [vmem:[%s5 + $0x8] sm:$0xf]
      %v2080 = vld [vmem:[%s5 + $0xc] sm:$0xf]
      %v2081 = vld [vmem:[%s5 + $0x10] sm:$0xf]
      %v2082 = vld [vmem:[%s5 + $0x14] sm:$0xf]
      %v2083 = vld [vmem:[%s5 + $0x18] sm:$0xf]
      %v2084 = vld [vmem:[%s5 + $0x1c] sm:$0xf]
      %v2085 = vld [vmem:[%s5 + $0x20] sm:$0xf]
      %v2086 = vld [vmem:[%s5 + $0x24] sm:$0xf]
      %v2087 = vld [vmem:[%s5 + $0x28] sm:$0xf]
      %v2088 = vld [vmem:[%s5 + $0x2c] sm:$0xf]
      %v2089 = vld [vmem:[%s5 + $0x30] sm:$0xf]
      %v2090 = vld [vmem:[%s5 + $0x34] sm:$0xf]
      %v2091 = vld [vmem:[%s5 + $0x38] sm:$0xf]
      %v2092 = vld [vmem:[%s5 + $0x3c] sm:$0xf]
      %s2093 = scalar_lea.vmem %s5, 64
      %v2094 = vld [vmem:[%s2093] sm:$0xf]
      %v2095 = vld [vmem:[%s2093 + $0x4] sm:$0xf]
      %v2096 = vld [vmem:[%s2093 + $0x8] sm:$0xf]
      %v2097 = vld [vmem:[%s2093 + $0xc] sm:$0xf]
      %v2098 = vld [vmem:[%s2093 + $0x10] sm:$0xf]
      %v2099 = vld [vmem:[%s2093 + $0x14] sm:$0xf]
      %v2100 = vld [vmem:[%s2093 + $0x18] sm:$0xf]
      %v2101 = vld [vmem:[%s2093 + $0x1c] sm:$0xf]
      %v2102 = vld [vmem:[%s2093 + $0x20] sm:$0xf]
      %v2103 = vld [vmem:[%s2093 + $0x24] sm:$0xf]
      %v2104 = vld [vmem:[%s2093 + $0x28] sm:$0xf]
      %v2105 = vld [vmem:[%s2093 + $0x2c] sm:$0xf]
      %v2106 = vld [vmem:[%s2093 + $0x30] sm:$0xf]
      %v2107 = vld [vmem:[%s2093 + $0x34] sm:$0xf]
      %v2108 = vld [vmem:[%s2093 + $0x38] sm:$0xf]
      %v2109 = vld [vmem:[%s2093 + $0x3c] sm:$0xf]
      %v2111 = vshrl.u32 %v2074, 16
      %v2113 = vshll.u32 %v2074, 16
      %v2115 = vrot.slane %v2113, 1
      %v2116 = vor.u32 %v2111, %v2115
      %v2118 = vshll.u32 %v2075, 16
      %v2120 = vrot.slane %v2118, 1
      %v2121 = vsel %vm1459, %v2116, %v2120
      %v2139 = vunpack.c.l.b16 %v2094
      %v2140 = vunpack.c.l.b16 %v2095
      %v2141 = vunpack.c.l.b16 %v2096
      %v2142 = vunpack.c.l.b16 %v2097
      %v2143 = vunpack.c.l.b16 %v2098
      %v2144 = vunpack.c.l.b16 %v2099
      %v2145 = vunpack.c.l.b16 %v2100
      %v2146 = vunpack.c.l.b16 %v2101
      %v2147 = vunpack.c.l.b16 %v2102
      %v2148 = vunpack.c.l.b16 %v2103
      %v2149 = vunpack.c.l.b16 %v2104
      %v2150 = vunpack.c.l.b16 %v2105
      %v2151 = vunpack.c.l.b16 %v2106
      %v2152 = vunpack.c.l.b16 %v2107
      %v2153 = vunpack.c.l.b16 %v2108
      %v2154 = vunpack.c.l.b16 %v2109
      %v2155 = vpack.c.b16 %v2140, %v2139
      %v2156 = vpack.c.b16 %v2142, %v2141
      %v2157 = vpack.c.b16 %v2144, %v2143
      %v2158 = vpack.c.b16 %v2146, %v2145
      %v2159 = vpack.c.b16 %v2148, %v2147
      %v2160 = vpack.c.b16 %v2150, %v2149
      %v2161 = vpack.c.b16 %v2152, %v2151
      %v2162 = vpack.c.b16 %v2154, %v2153
      %2171 = vmatprep.subr.bf16.mxu0 0
      %2172 = vmatpush1.bf16.msra.mxu0 %v2162
      %2173 = vmatprep.subr.bf16.mxu0 0
      %2174 = vmatpush1.bf16.msra.mxu0 %v2161
      %2175 = vmatprep.subr.bf16.mxu0 0
      %2176 = vmatpush1.bf16.msra.mxu0 %v2160
      %2177 = vmatprep.subr.bf16.mxu0 0
      %2178 = vmatpush1.bf16.msra.mxu0 %v2159
      %2179 = vmatprep.subr.bf16.mxu0 0
      %2180 = vmatpush1.bf16.msra.mxu0 %v2158
      %2181 = vmatprep.subr.bf16.mxu0 0
      %2182 = vmatpush1.bf16.msra.mxu0 %v2157
      %2183 = vmatprep.subr.bf16.mxu0 0
      %2184 = vmatpush1.bf16.msra.mxu0 %v2156
      %2185 = vmatprep.subr.bf16.mxu0 0
      %2186 = vmatpush1.bf16.msra.mxu0 %v2155
      %2187 = vmatprep.subr.bf16.mxu0 0
      %2188 = vmatpush2.bf16.msra.mxu0 0
      %2189 = vmatprep.subr.bf16.mxu0 0
      %2190 = vmatpush2.bf16.msra.mxu0 0
      %2191 = vmatprep.subr.bf16.mxu0 0
      %2192 = vmatpush2.bf16.msra.mxu0 0
      %2193 = vmatprep.subr.bf16.mxu0 0
      %2194 = vmatpush2.bf16.msra.mxu0 0
      %2195 = vmatprep.subr.bf16.mxu0 0
      %2196 = vmatpush2.bf16.msra.mxu0 0
      %2197 = vmatprep.subr.bf16.mxu0 0
      %2198 = vmatpush2.bf16.msra.mxu0 0
      %2199 = vmatprep.subr.bf16.mxu0 0
      %2200 = vmatpush2.bf16.msra.mxu0 0
      %2201 = vmatprep.subr.bf16.mxu0 0
      %2202 = vmatpush2.bf16.msra.mxu0 0
      %2203 = vmatprep.mubr.bf16.mxu0 0
      %2204 = vmatmul.mubr.bf16.gmra.mxu0 %v2121
      %v2205 = vpop.f32.mrf.mxu0
      %v2206 = vadd.f32 0.0, %v2205
      %v2207 = vpop.f32.mrf.mxu0
      %v2208 = vpop.f32.mrf.mxu0
      %v2209 = vadd.f32 0.0, %v2208
      %v2210 = vpop.f32.mrf.mxu0
      %2211 = vdwg.mxu0
      %v2228 = vunpack.c.l.b16 %v2077
      %v2229 = vunpack.c.l.b16 %v2078
      %v2230 = vunpack.c.l.b16 %v2079
      %v2231 = vunpack.c.l.b16 %v2080
      %v2232 = vunpack.c.l.b16 %v2081
      %v2233 = vunpack.c.l.b16 %v2082
      %v2234 = vunpack.c.l.b16 %v2083
      %v2235 = vunpack.c.l.b16 %v2084
      %v2236 = vunpack.c.l.b16 %v2085
      %v2237 = vunpack.c.l.b16 %v2086
      %v2238 = vunpack.c.l.b16 %v2087
      %v2239 = vunpack.c.l.b16 %v2088
      %v2240 = vunpack.c.l.b16 %v2089
      %v2241 = vunpack.c.l.b16 %v2090
      %v2242 = vunpack.c.l.b16 %v2091
      %v2243 = vunpack.c.l.b16 %v2092
      %v2244 = vpack.c.b16 %v2229, %v2228
      %v2245 = vpack.c.b16 %v2231, %v2230
      %v2246 = vpack.c.b16 %v2233, %v2232
      %v2247 = vpack.c.b16 %v2235, %v2234
      %v2248 = vpack.c.b16 %v2237, %v2236
      %v2249 = vpack.c.b16 %v2239, %v2238
      %v2250 = vpack.c.b16 %v2241, %v2240
      %v2251 = vpack.c.b16 %v2243, %v2242
      %2260 = vmatprep.subr.bf16.mxu0 0
      %2261 = vmatpush1.bf16.msra.mxu0 %v2251
      %2262 = vmatprep.subr.bf16.mxu0 0
      %2263 = vmatpush1.bf16.msra.mxu0 %v2250
      %2264 = vmatprep.subr.bf16.mxu0 0
      %2265 = vmatpush1.bf16.msra.mxu0 %v2249
      %2266 = vmatprep.subr.bf16.mxu0 0
      %2267 = vmatpush1.bf16.msra.mxu0 %v2248
      %2268 = vmatprep.subr.bf16.mxu0 0
      %2269 = vmatpush1.bf16.msra.mxu0 %v2247
      %2270 = vmatprep.subr.bf16.mxu0 0
      %2271 = vmatpush1.bf16.msra.mxu0 %v2246
      %2272 = vmatprep.subr.bf16.mxu0 0
      %2273 = vmatpush1.bf16.msra.mxu0 %v2245
      %2274 = vmatprep.subr.bf16.mxu0 0
      %2275 = vmatpush1.bf16.msra.mxu0 %v2244
      %2276 = vmatprep.subr.bf16.mxu0 0
      %2277 = vmatpush2.bf16.msra.mxu0 0
      %2278 = vmatprep.subr.bf16.mxu0 0
      %2279 = vmatpush2.bf16.msra.mxu0 0
      %2280 = vmatprep.subr.bf16.mxu0 0
      %2281 = vmatpush2.bf16.msra.mxu0 0
      %2282 = vmatprep.subr.bf16.mxu0 0
      %2283 = vmatpush2.bf16.msra.mxu0 0
      %2284 = vmatprep.subr.bf16.mxu0 0
      %2285 = vmatpush2.bf16.msra.mxu0 0
      %2286 = vmatprep.subr.bf16.mxu0 0
      %2287 = vmatpush2.bf16.msra.mxu0 0
      %2288 = vmatprep.subr.bf16.mxu0 0
      %2289 = vmatpush2.bf16.msra.mxu0 0
      %2290 = vmatprep.subr.bf16.mxu0 0
      %2291 = vmatpush2.bf16.msra.mxu0 0
      %2292 = vmatprep.mubr.bf16.mxu0 0
      %2293 = vmatmul.mubr.bf16.gmra.mxu0 %v2074
      %v2294 = vpop.f32.mrf.mxu0
      %v2295 = vadd.f32 %v2206, %v2294
      %v2296 = vpop.f32.mrf.mxu0
      %v2297 = vpop.f32.mrf.mxu0
      %v2298 = vadd.f32 %v2209, %v2297
      %v2299 = vpop.f32.mrf.mxu0
      %2300 = vdwg.mxu0
      %s2301 = scalar_lea.vmem %s5, 128
      %v2302 = vld [vmem:[%s2301] sm:$0xf]
      %v2303 = vld [vmem:[%s2301 + $0x4] sm:$0xf]
      %v2304 = vld [vmem:[%s2301 + $0x8] sm:$0xf]
      %v2305 = vld [vmem:[%s2301 + $0xc] sm:$0xf]
      %v2306 = vld [vmem:[%s2301 + $0x10] sm:$0xf]
      %v2307 = vld [vmem:[%s2301 + $0x14] sm:$0xf]
      %v2308 = vld [vmem:[%s2301 + $0x18] sm:$0xf]
      %v2309 = vld [vmem:[%s2301 + $0x1c] sm:$0xf]
      %v2310 = vld [vmem:[%s2301 + $0x20] sm:$0xf]
      %v2311 = vld [vmem:[%s2301 + $0x24] sm:$0xf]
      %v2312 = vld [vmem:[%s2301 + $0x28] sm:$0xf]
      %v2313 = vld [vmem:[%s2301 + $0x2c] sm:$0xf]
      %v2314 = vld [vmem:[%s2301 + $0x30] sm:$0xf]
      %v2315 = vld [vmem:[%s2301 + $0x34] sm:$0xf]
      %v2316 = vld [vmem:[%s2301 + $0x38] sm:$0xf]
      %v2317 = vld [vmem:[%s2301 + $0x3c] sm:$0xf]
      %v2320 = vrot.slane %v2074, 1
      %v2321 = vrot.slane %v2075, 1
      %v2322 = vsel %vm1688, %v2320, %v2321
      %v2340 = vunpack.c.l.b16 %v2302
      %v2341 = vunpack.c.l.b16 %v2303
      %v2342 = vunpack.c.l.b16 %v2304
      %v2343 = vunpack.c.l.b16 %v2305
      %v2344 = vunpack.c.l.b16 %v2306
      %v2345 = vunpack.c.l.b16 %v2307
      %v2346 = vunpack.c.l.b16 %v2308
      %v2347 = vunpack.c.l.b16 %v2309
      %v2348 = vunpack.c.l.b16 %v2310
      %v2349 = vunpack.c.l.b16 %v2311
      %v2350 = vunpack.c.l.b16 %v2312
      %v2351 = vunpack.c.l.b16 %v2313
      %v2352 = vunpack.c.l.b16 %v2314
      %v2353 = vunpack.c.l.b16 %v2315
      %v2354 = vunpack.c.l.b16 %v2316
      %v2355 = vunpack.c.l.b16 %v2317
      %v2356 = vpack.c.b16 %v2341, %v2340
      %v2357 = vpack.c.b16 %v2343, %v2342
      %v2358 = vpack.c.b16 %v2345, %v2344
      %v2359 = vpack.c.b16 %v2347, %v2346
      %v2360 = vpack.c.b16 %v2349, %v2348
      %v2361 = vpack.c.b16 %v2351, %v2350
      %v2362 = vpack.c.b16 %v2353, %v2352
      %v2363 = vpack.c.b16 %v2355, %v2354
      %2372 = vmatprep.subr.bf16.mxu0 0
      %2373 = vmatpush1.bf16.msra.mxu0 %v2363
      %2374 = vmatprep.subr.bf16.mxu0 0
      %2375 = vmatpush1.bf16.msra.mxu0 %v2362
      %2376 = vmatprep.subr.bf16.mxu0 0
      %2377 = vmatpush1.bf16.msra.mxu0 %v2361
      %2378 = vmatprep.subr.bf16.mxu0 0
      %2379 = vmatpush1.bf16.msra.mxu0 %v2360
      %2380 = vmatprep.subr.bf16.mxu0 0
      %2381 = vmatpush1.bf16.msra.mxu0 %v2359
      %2382 = vmatprep.subr.bf16.mxu0 0
      %2383 = vmatpush1.bf16.msra.mxu0 %v2358
      %2384 = vmatprep.subr.bf16.mxu0 0
      %2385 = vmatpush1.bf16.msra.mxu0 %v2357
      %2386 = vmatprep.subr.bf16.mxu0 0
      %2387 = vmatpush1.bf16.msra.mxu0 %v2356
      %2388 = vmatprep.subr.bf16.mxu0 0
      %2389 = vmatpush2.bf16.msra.mxu0 0
      %2390 = vmatprep.subr.bf16.mxu0 0
      %2391 = vmatpush2.bf16.msra.mxu0 0
      %2392 = vmatprep.subr.bf16.mxu0 0
      %2393 = vmatpush2.bf16.msra.mxu0 0
      %2394 = vmatprep.subr.bf16.mxu0 0
      %2395 = vmatpush2.bf16.msra.mxu0 0
      %2396 = vmatprep.subr.bf16.mxu0 0
      %2397 = vmatpush2.bf16.msra.mxu0 0
      %2398 = vmatprep.subr.bf16.mxu0 0
      %2399 = vmatpush2.bf16.msra.mxu0 0
      %2400 = vmatprep.subr.bf16.mxu0 0
      %2401 = vmatpush2.bf16.msra.mxu0 0
      %2402 = vmatprep.subr.bf16.mxu0 0
      %2403 = vmatpush2.bf16.msra.mxu0 0
      %2404 = vmatprep.mubr.bf16.mxu0 0
      %2405 = vmatmul.mubr.bf16.gmra.mxu0 %v2322
      %v2406 = vpop.f32.mrf.mxu0
      %v2407 = vadd.f32 0.0, %v2406
      %v2408 = vpop.f32.mrf.mxu0
      %v2409 = vpop.f32.mrf.mxu0
      %v2410 = vadd.f32 0.0, %v2409
      %v2411 = vpop.f32.mrf.mxu0
      %2412 = vdwg.mxu0
      %v2413 = vadd.f32 %v2295, %v2407
      %v2414 = vadd.f32 %v2298, %v2410
      %v2415 = vlaneseq
      %v2416 = vshrl.u32 %v2415, 7
      %v2417 = vsub.s32 0, %v2416
      %v2418 = vrot.slane %v2076, %v2417
      %v2419 = vadd.f32 %v2413, %v2418
      %v2420 = vadd.f32 %v2414, %v2418
      %v2421 = vmax.f32 %v2419, 0.0
      %v2422 = vmax.f32 %v2420, 0.0
      %v2423 = vld [vmem:[%s6] sm:$0xf]
      %v2424 = vld [vmem:[%s6 + $0x4] sm:$0xf]
      %v2425 = vld [vmem:[%s6 + $0x8] sm:$0xf]
      %v2426 = vld [vmem:[%s6 + $0xc] sm:$0xf]
      %v2427 = vld [vmem:[%s6 + $0x10] sm:$0xf]
      %v2428 = vld [vmem:[%s6 + $0x14] sm:$0xf]
      %v2429 = vld [vmem:[%s6 + $0x18] sm:$0xf]
      %v2430 = vld [vmem:[%s6 + $0x1c] sm:$0xf]
      %v2431 = vld [vmem:[%s6 + $0x20] sm:$0xf]
      %v2432 = vld [vmem:[%s6 + $0x24] sm:$0xf]
      %v2433 = vld [vmem:[%s6 + $0x28] sm:$0xf]
      %v2434 = vld [vmem:[%s6 + $0x2c] sm:$0xf]
      %v2435 = vld [vmem:[%s6 + $0x30] sm:$0xf]
      %v2436 = vld [vmem:[%s6 + $0x34] sm:$0xf]
      %v2437 = vld [vmem:[%s6 + $0x38] sm:$0xf]
      %v2438 = vld [vmem:[%s6 + $0x3c] sm:$0xf]
      %v2439 = vld [vmem:[%s7 + $0x3] sm:$0x1]
      %v2440 = vlaneseq
      %v2441 = vshrl.u32 %v2440, 7
      %v2442 = vsub.s32 0, %v2441
      %v2443 = vrot.slane %v2439, %v2442
      %v2460 = vunpack.c.l.b16 %v2423
      %v2461 = vunpack.c.l.b16 %v2424
      %v2462 = vunpack.c.l.b16 %v2425
      %v2463 = vunpack.c.l.b16 %v2426
      %v2464 = vunpack.c.l.b16 %v2427
      %v2465 = vunpack.c.l.b16 %v2428
      %v2466 = vunpack.c.l.b16 %v2429
      %v2467 = vunpack.c.l.b16 %v2430
      %v2468 = vunpack.c.l.b16 %v2431
      %v2469 = vunpack.c.l.b16 %v2432
      %v2470 = vunpack.c.l.b16 %v2433
      %v2471 = vunpack.c.l.b16 %v2434
      %v2472 = vunpack.c.l.b16 %v2435
      %v2473 = vunpack.c.l.b16 %v2436
      %v2474 = vunpack.c.l.b16 %v2437
      %v2475 = vunpack.c.l.b16 %v2438
      %v2476 = vpack.c.b16 %v2461, %v2460
      %v2477 = vpack.c.b16 %v2463, %v2462
      %v2478 = vpack.c.b16 %v2465, %v2464
      %v2479 = vpack.c.b16 %v2467, %v2466
      %v2480 = vpack.c.b16 %v2469, %v2468
      %v2481 = vpack.c.b16 %v2471, %v2470
      %v2482 = vpack.c.b16 %v2473, %v2472
      %v2483 = vpack.c.b16 %v2475, %v2474
      %2492 = vmatprep.subr.bf16.mxu0 0
      %2493 = vmatpush1.bf16.msra.mxu0 %v2483
      %2494 = vmatprep.subr.bf16.mxu0 0
      %2495 = vmatpush1.bf16.msra.mxu0 %v2482
      %2496 = vmatprep.subr.bf16.mxu0 0
      %2497 = vmatpush1.bf16.msra.mxu0 %v2481
      %2498 = vmatprep.subr.bf16.mxu0 0
      %2499 = vmatpush1.bf16.msra.mxu0 %v2480
      %2500 = vmatprep.subr.bf16.mxu0 0
      %2501 = vmatpush1.bf16.msra.mxu0 %v2479
      %2502 = vmatprep.subr.bf16.mxu0 0
      %2503 = vmatpush1.bf16.msra.mxu0 %v2478
      %2504 = vmatprep.subr.bf16.mxu0 0
      %2505 = vmatpush1.bf16.msra.mxu0 %v2477
      %2506 = vmatprep.subr.bf16.mxu0 0
      %2507 = vmatpush1.bf16.msra.mxu0 %v2476
      %2508 = vmatprep.subr.bf16.mxu0 0
      %2509 = vmatpush2.bf16.msra.mxu0 0
      %2510 = vmatprep.subr.bf16.mxu0 0
      %2511 = vmatpush2.bf16.msra.mxu0 0
      %2512 = vmatprep.subr.bf16.mxu0 0
      %2513 = vmatpush2.bf16.msra.mxu0 0
      %2514 = vmatprep.subr.bf16.mxu0 0
      %2515 = vmatpush2.bf16.msra.mxu0 0
      %2516 = vmatprep.subr.bf16.mxu0 0
      %2517 = vmatpush2.bf16.msra.mxu0 0
      %2518 = vmatprep.subr.bf16.mxu0 0
      %2519 = vmatpush2.bf16.msra.mxu0 0
      %2520 = vmatprep.subr.bf16.mxu0 0
      %2521 = vmatpush2.bf16.msra.mxu0 0
      %2522 = vmatprep.subr.bf16.mxu0 0
      %2523 = vmatpush2.bf16.msra.mxu0 0
      %2524 = vmatprep.mubr.bf16.mxu0 0
      %2525 = vmatmul.mubr.bf16.gmra.mxu0 %v429
      %v2526 = vpop.f32.mrf.mxu0
      %v2527 = vadd.f32 %v2443, %v2526
      %v2528 = vpop.f32.mrf.mxu0
      %v2529 = vpop.f32.mrf.mxu0
      %v2530 = vadd.f32 %v2443, %v2529
      %v2531 = vpop.f32.mrf.mxu0
      %2532 = vdwg.mxu0
      %v2533 = vadd.f32 %v2421, %v2527
      %v2534 = vadd.f32 %v2422, %v2530
      %2535 = vst [vmem:[%s393] sm:$0xff] %v2533
      %2536 = vst [vmem:[%s393 + $0x8] sm:$0xff] %v2534
      %s2537 = smul.u32 2, %s19
      %p2538 = scmp.lt.s32.totalorder %s2537, 11
      %s2539 = scalar_select %p2538, %s2537, 11
      %s2540 = smul.addr %s2539, 8
      %s2541 = scalar_lea.vmem %s8, %s2540
      // Predicated region
      $region53: #{_lambda_.1} parent=51 // pred_check
        %p2542 = pneg %p232
      $region54: #{_lambda_.1} parent=51 // pred_check_branch
        %2544 = sbr.rel (%p2542) target = $region56
      $region55: #{_lambda_.1} parent=51 // pred_region
        %s2545 = smul.u32 2, %s19
      $region56: #{_lambda_.1} parent=51 // pred_fallthru
        _
    $region52: #{_lambda_.1} parent=5 // pred_fallthru
      _
    %p2546 = scmp.le.s32.totalorder 2, %s14
    // Predicated region
    $region57: #{_lambda_.1} parent=5 // pred_check
      %p2547 = pneg %p2546
    $region58: #{_lambda_.1} parent=5 // pred_check_branch
      %2549 = sbr.rel (%p2547) target = $region60
    $region59: #{_lambda_.1} parent=5 // pred_region
      %s2550 = ssub.s32 %s14, 2
      // Predicated region
      $region61: #{_lambda_.1} parent=59 // pred_check
        %p2551 = pneg %p238
      $region62: #{_lambda_.1} parent=59 // pred_check_branch
        %2553 = sbr.rel (%p2551) target = $region64
      $region63: #{_lambda_.1} parent=59 // pred_region
        %s2554 = smul.u32 2, %s20
        %p2555 = scmp.lt.s32.totalorder %s2554, 11
        %s2556 = scalar_select %p2555, %s2554, 11
        %s2557 = smul.addr %s2556, 8
        %s2558 = scalar_lea.vmem %s8, %s2557
      $region64: #{_lambda_.1} parent=59 // pred_fallthru
        _
    $region60: #{_lambda_.1} parent=5 // pred_fallthru
      _
  $region6: #{_lambda_.1} parent=0 // loop_footer
    %s18 = sadd.s32 1, %s14
  $region7: #{_lambda_.1} parent=0 // loop_footer_branch
    %13 = sbr.rel target = $region3
  $region8: #{_lambda_.1} parent=0 // loop_exit
    _

</llo_original>
